<compile_context>
chip_gen: v7x
topology: tpu7x:2x2x1
jax: 0.10.0
libtpu: 0.0.40
codegen_flags: <defaults>
</compile_context>

<pallas_src>
import functools

import jax
import jax.numpy as jnp
from jax.experimental import pallas as pl
from jax.experimental.pallas import tpu as pltpu


def _layer_norm(z, w_row, b_row, eps=1e-5):
    mu = jnp.mean(z, axis=-1, keepdims=True)
    var = jnp.mean((z - mu) ** 2, axis=-1, keepdims=True)
    return (z - mu) * jax.lax.rsqrt(var + eps) * w_row + b_row


def _encoder_block_kernel(
    xq_ref, xkv_ref,
    ln1w_ref, ln1b_ref,
    wq_ref, wk_ref, wv_ref, wo_ref,
    ln2w_ref, ln2b_ref,
    w1_ref, b1_ref, w2_ref, b2_ref,
    o_ref,
    *, num_heads: int, is_first: bool,
):
    f32 = jnp.float32
    cdt = wq_ref.dtype              # matmul compute dtype (bfloat16)

    x_q = xq_ref[...]               # (T, D) f32 : this tile's query rows
    x_kv = xkv_ref[...]             # (S, D) f32 : full sequence (K/V source)
    D = x_q.shape[-1]
    dh = D // num_heads

    ln1w = ln1w_ref[...]
    ln1b = ln1b_ref[...]
    h_q = _layer_norm(x_q, ln1w, ln1b)
    h_kv = _layer_norm(x_kv, ln1w, ln1b)

    # PyTorch branch: when is_first the residual is taken off LN(input).
    base = h_q if is_first else x_q

    hq_c = h_q.astype(cdt)
    hkv_c = h_kv.astype(cdt)

    # Fused q/k/v projections (1/sqrt(dh) already folded into wq by the wrapper).
    q = jnp.dot(hq_c, wq_ref[...], preferred_element_type=f32)      # (T, D)
    k = jnp.dot(hkv_c, wk_ref[...], preferred_element_type=f32)     # (S, D)
    v = jnp.dot(hkv_c, wv_ref[...], preferred_element_type=f32)     # (S, D)

    # Per-head attention with the output projection folded into the head loop:
    #   attn_out = sum_h softmax(q_h k_h^T) v_h @ wo[h]      (no concat, no extra slab)
    attn_out = jnp.zeros(base.shape, f32)
    for h in range(num_heads):
        lo, hi = h * dh, (h + 1) * dh
        qs = q[:, lo:hi].astype(cdt)                                 # (T, dh)
        ks = k[:, lo:hi].astype(cdt)                                 # (S, dh)
        vs = v[:, lo:hi].astype(cdt)                                 # (S, dh)
        scores = jax.lax.dot_general(                                # (T, S) f32
            qs, ks, (((1,), (1,)), ((), ())), preferred_element_type=f32)
        scores = scores - jnp.max(scores, axis=-1, keepdims=True)
        p = jnp.exp(scores)
        p = p * pl.reciprocal(jnp.sum(p, axis=-1, keepdims=True), approx=True)
        ctx = jnp.dot(p.astype(cdt), vs, preferred_element_type=f32)     # (T, dh)
        attn_out = attn_out + jnp.dot(                                   # (T, D)
            ctx.astype(cdt), wo_ref[h], preferred_element_type=f32)

    resid1 = base + attn_out

    # --- FFN block ---
    h2 = _layer_norm(resid1, ln2w_ref[...], ln2b_ref[...])
    f = jnp.dot(h2.astype(cdt), w1_ref[...], preferred_element_type=f32) + b1_ref[...]
    f = jnp.maximum(f, 0.0)
    f = jnp.dot(f.astype(cdt), w2_ref[...], preferred_element_type=f32) + b2_ref[...]

    o_ref[...] = (resid1 + f).astype(o_ref.dtype)


def transformer_encoder_block(x, params, *, num_heads: int, is_first: bool = False,
                              tile_s: int = 128, compute_dtype=jnp.bfloat16):
    """x: (B, S, D) float32. params: dict of pre-transposed f32 weights/biases."""
    B, S, D = x.shape
    assert D % num_heads == 0, "d_model must be divisible by num_heads"
    dh = D // num_heads
    H4 = 4 * D

    tile_s = min(tile_s, S)
    if S % tile_s != 0 or tile_s % 8 != 0:
        tile_s = S                       # fall back to one full-sequence tile
    num_s_tiles = S // tile_s

    cdt = compute_dtype
    # Fold the attention scale into wq; cast matmul weights to bf16; pre-split wo per
    # head so the kernel indexes it on the (tile-aligned) leading axis.
    wq = (params["wq"] * (dh ** -0.5)).astype(cdt)
    wk = params["wk"].astype(cdt)
    wv = params["wv"].astype(cdt)
    wo3 = params["wo"].reshape(num_heads, dh, D).astype(cdt)
    w1 = params["w1"].astype(cdt)
    w2 = params["w2"].astype(cdt)

    def const(arr):
        shape = arr.shape
        return pl.BlockSpec(shape, lambda b, s: (0,) * len(shape))

    kernel = functools.partial(
        _encoder_block_kernel, num_heads=num_heads, is_first=is_first)

    flops = int(B * S * D * (24 * D + 4 * S))
    transcendentals = int(B * num_heads * S * S)
    bytes_accessed = int(
        3 * B * S * D * 4                                  # x (tiled + full) + out, f32
        + 12 * D * D * jnp.dtype(cdt).itemsize             # matmul weights, bf16
        + (4 * D + 2 * H4) * 4)                            # LN params + biases, f32

    grid_spec = pltpu.PrefetchScalarGridSpec(
        num_scalar_prefetch=0,
        grid=(B, num_s_tiles),
        in_specs=[
            pl.BlockSpec((None, tile_s, D), lambda b, s: (b, s, 0)),   # query-row tile
            pl.BlockSpec((None, S, D), lambda b, s: (b, 0, 0)),        # full seq (K/V)
            const(params["ln1_w"]), const(params["ln1_b"]),
            const(wq), const(wk), const(wv), const(wo3),
            const(params["ln2_w"]), const(params["ln2_b"]),
            const(w1), const(params["b1"]), const(w2), const(params["b2"]),
        ],
        out_specs=pl.BlockSpec((None, tile_s, D), lambda b, s: (b, s, 0)),
    )

    return pl.pallas_call(
        kernel,
        out_shape=jax.ShapeDtypeStruct((B, S, D), x.dtype),
        grid_spec=grid_spec,
        compiler_params=pltpu.CompilerParams(
            dimension_semantics=("parallel", "parallel"),
            vmem_limit_bytes=48 * 1024 * 1024,   # safe on v5e/v6e (128 MiB) and v7x (64 MiB)
        ),
        cost_estimate=pl.CostEstimate(
            flops=flops, transcendentals=transcendentals,
            bytes_accessed=bytes_accessed),
    )(
        x, x,
        params["ln1_w"], params["ln1_b"],
        wq, wk, wv, wo3,
        params["ln2_w"], params["ln2_b"],
        w1, params["b1"], w2, params["b2"],
    )


def _reference(x, p, num_heads, is_first=False):
    """Pure-JAX f32 reference mirroring the PyTorch forward."""
    def ln(z, w, b, eps=1e-5):
        mu = jnp.mean(z, axis=-1, keepdims=True)
        var = jnp.mean((z - mu) ** 2, axis=-1, keepdims=True)
        return (z - mu) / jnp.sqrt(var + eps) * w + b

    B, S, D = x.shape
    dh = D // num_heads
    h = ln(x, p["ln1_w"], p["ln1_b"])
    base = h if is_first else x
    q = (h @ p["wq"]).reshape(B, S, num_heads, dh).transpose(0, 2, 1, 3)
    k = (h @ p["wk"]).reshape(B, S, num_heads, dh).transpose(0, 2, 1, 3)
    v = (h @ p["wv"]).reshape(B, S, num_heads, dh).transpose(0, 2, 1, 3)
    q = q * dh ** (-0.5)
    attn = jax.nn.softmax(jnp.einsum("bhtd,bhsd->bhts", q, k), axis=-1)
    out = jnp.einsum("bhts,bhsd->bhtd", attn, v).transpose(0, 2, 1, 3).reshape(B, S, D)
    out = out @ p["wo"]
    resid1 = base + out
    h2 = ln(resid1, p["ln2_w"], p["ln2_b"])
    f = jnp.maximum(h2 @ p["w1"] + p["b1"], 0.0) @ p["w2"] + p["b2"]
    return resid1 + f


if __name__ == "__main__":
    B, S, D, H = 2, 16, 32, 4
    H4 = 4 * D

    key = jax.random.PRNGKey(0)
    keys = jax.random.split(key, 12)

    def w(k, shape, scale):
        return (jax.random.normal(k, shape, jnp.float32) * scale).astype(jnp.float32)

    params = {
        "ln1_w": jnp.ones((1, D), jnp.float32),
        "ln1_b": jnp.zeros((1, D), jnp.float32),
        "wq": w(keys[0], (D, D), D ** -0.5),
        "wk": w(keys[1], (D, D), D ** -0.5),
        "wv": w(keys[2], (D, D), D ** -0.5),
        "wo": w(keys[3], (D, D), D ** -0.5),
        "ln2_w": jnp.ones((1, D), jnp.float32),
        "ln2_b": jnp.zeros((1, D), jnp.float32),
        "w1": w(keys[4], (D, H4), (2.0 / D) ** 0.5),
        "b1": jnp.zeros((1, H4), jnp.float32),
        "w2": w(keys[5], (H4, D), H4 ** -0.5),
        "b2": jnp.zeros((1, D), jnp.float32),
    }

    x = jax.random.normal(keys[6], (B, S, D), jnp.float32)

    # bf16 matmul operands (f32 accumulation) => compare to the f32 reference with a
    # widened tolerance, as recommended in the review.
    TOL = 5e-2

    # Multi-tile path (grid = (B, 2)), is_first=False.
    out = transformer_encoder_block(x, params, num_heads=H, is_first=False, tile_s=8)
    out = jax.block_until_ready(out)
    ref = _reference(x, params, H, is_first=False)
    assert out.shape == (B, S, D)
    assert jnp.allclose(out, ref, atol=TOL, rtol=TOL), "mismatch vs reference (is_first=False)"

    # Single-tile path, is_first=True branch.
    out2 = transformer_encoder_block(x, params, num_heads=H, is_first=True)
    out2 = jax.block_until_ready(out2)
    ref2 = _reference(x, params, H, is_first=True)
    assert jnp.allclose(out2, ref2, atol=TOL, rtol=TOL), "mismatch vs reference (is_first=True)"

    print("KERNEL_OK")
</pallas_src>

<mosaic_0001>
module attributes {stable_mosaic.version = 11 : i64} {
  func.func @_encoder_block_kernel(%arg0: i32, %arg1: i32, %arg2: memref<1x8x32xf32, #tpu.memory_space<vmem>>, %arg3: memref<1x16x32xf32, #tpu.memory_space<vmem>>, %arg4: memref<1x32xf32, #tpu.memory_space<vmem>>, %arg5: memref<1x32xf32, #tpu.memory_space<vmem>>, %arg6: memref<32x32xbf16, #tpu.memory_space<vmem>>, %arg7: memref<32x32xbf16, #tpu.memory_space<vmem>>, %arg8: memref<32x32xbf16, #tpu.memory_space<vmem>>, %arg9: memref<4x8x32xbf16, #tpu.memory_space<vmem>>, %arg10: memref<1x32xf32, #tpu.memory_space<vmem>>, %arg11: memref<1x32xf32, #tpu.memory_space<vmem>>, %arg12: memref<32x128xbf16, #tpu.memory_space<vmem>>, %arg13: memref<1x128xf32, #tpu.memory_space<vmem>>, %arg14: memref<128x32xbf16, #tpu.memory_space<vmem>>, %arg15: memref<1x32xf32, #tpu.memory_space<vmem>>, %arg16: memref<1x8x32xf32, #tpu.memory_space<vmem>>) attributes {dimension_semantics = [#tpu.dimension_semantics<parallel>, #tpu.dimension_semantics<parallel>], iteration_bounds = array<i64: 2, 2>, scalar_prefetch = 0 : i64, scratch_operands = 0 : i64, tpu.core_type = #tpu.core_type<tc>, window_params = [{transform_indices = @transform_0, window_bounds = array<i64: 1, 8, 32>}, {transform_indices = @transform_1, window_bounds = array<i64: 1, 16, 32>}, {pipeline_mode = #tpu.pipeline_mode<synchronous>, transform_indices = @transform_2, window_bounds = array<i64: 1, 32>}, {pipeline_mode = #tpu.pipeline_mode<synchronous>, transform_indices = @transform_3, window_bounds = array<i64: 1, 32>}, {pipeline_mode = #tpu.pipeline_mode<synchronous>, transform_indices = @transform_4, window_bounds = array<i64: 32, 32>}, {pipeline_mode = #tpu.pipeline_mode<synchronous>, transform_indices = @transform_5, window_bounds = array<i64: 32, 32>}, {pipeline_mode = #tpu.pipeline_mode<synchronous>, transform_indices = @transform_6, window_bounds = array<i64: 32, 32>}, {pipeline_mode = #tpu.pipeline_mode<synchronous>, transform_indices = @transform_7, window_bounds = array<i64: 4, 8, 32>}, {pipeline_mode = #tpu.pipeline_mode<synchronous>, transform_indices = @transform_8, window_bounds = array<i64: 1, 32>}, {pipeline_mode = #tpu.pipeline_mode<synchronous>, transform_indices = @transform_9, window_bounds = array<i64: 1, 32>}, {pipeline_mode = #tpu.pipeline_mode<synchronous>, transform_indices = @transform_10, window_bounds = array<i64: 32, 128>}, {pipeline_mode = #tpu.pipeline_mode<synchronous>, transform_indices = @transform_11, window_bounds = array<i64: 1, 128>}, {pipeline_mode = #tpu.pipeline_mode<synchronous>, transform_indices = @transform_12, window_bounds = array<i64: 128, 32>}, {pipeline_mode = #tpu.pipeline_mode<synchronous>, transform_indices = @transform_13, window_bounds = array<i64: 1, 32>}, {transform_indices = @transform_14, window_bounds = array<i64: 1, 8, 32>}]} {
    %c0 = arith.constant 0 : index
    %c0_0 = arith.constant 0 : index
    %c0_1 = arith.constant 0 : index
    %0 = vector.load %arg2[%c0, %c0_0, %c0_1] : memref<1x8x32xf32, #tpu.memory_space<vmem>>, vector<1x8x32xf32>
    %1 = vector.shape_cast %0 : vector<1x8x32xf32> to vector<8x32xf32>
    %c0_2 = arith.constant 0 : index
    %c0_3 = arith.constant 0 : index
    %c0_4 = arith.constant 0 : index
    %2 = vector.load %arg3[%c0_2, %c0_3, %c0_4] : memref<1x16x32xf32, #tpu.memory_space<vmem>>, vector<1x16x32xf32>
    %3 = vector.shape_cast %2 : vector<1x16x32xf32> to vector<16x32xf32>
    %c0_5 = arith.constant 0 : index
    %c0_6 = arith.constant 0 : index
    %4 = vector.load %arg4[%c0_5, %c0_6] : memref<1x32xf32, #tpu.memory_space<vmem>>, vector<1x32xf32>
    %c0_7 = arith.constant 0 : index
    %c0_8 = arith.constant 0 : index
    %5 = vector.load %arg5[%c0_7, %c0_8] : memref<1x32xf32, #tpu.memory_space<vmem>>, vector<1x32xf32>
    %cst = arith.constant dense<0.000000e+00> : vector<8xf32>
    %6 = vector.multi_reduction <add>, %1, %cst [1] : vector<8x32xf32> to vector<8xf32>
    %7 = vector.shape_cast %6 : vector<8xf32> to vector<8x1xf32>
    %cst_9 = arith.constant 3.200000e+01 : f32
    %8 = vector.broadcast %cst_9 : f32 to vector<8x1xf32>
    %9 = arith.divf %7, %8 : vector<8x1xf32>
    %10 = vector.broadcast %9 : vector<8x1xf32> to vector<8x32xf32>
    %11 = arith.subf %1, %10 : vector<8x32xf32>
    %12 = arith.mulf %11, %11 : vector<8x32xf32>
    %cst_10 = arith.constant dense<0.000000e+00> : vector<8xf32>
    %13 = vector.multi_reduction <add>, %12, %cst_10 [1] : vector<8x32xf32> to vector<8xf32>
    %14 = vector.shape_cast %13 : vector<8xf32> to vector<8x1xf32>
    %cst_11 = arith.constant 3.200000e+01 : f32
    %15 = vector.broadcast %cst_11 : f32 to vector<8x1xf32>
    %16 = arith.divf %14, %15 : vector<8x1xf32>
    %17 = vector.broadcast %9 : vector<8x1xf32> to vector<8x32xf32>
    %18 = arith.subf %1, %17 : vector<8x32xf32>
    %cst_12 = arith.constant 9.99999974E-6 : f32
    %19 = vector.broadcast %cst_12 : f32 to vector<8x1xf32>
    %20 = arith.addf %16, %19 : vector<8x1xf32>
    %21 = math.rsqrt %20 : vector<8x1xf32>
    %22 = vector.broadcast %21 : vector<8x1xf32> to vector<8x32xf32>
    %23 = arith.mulf %18, %22 : vector<8x32xf32>
    %24 = vector.broadcast %4 : vector<1x32xf32> to vector<8x32xf32>
    %25 = arith.mulf %23, %24 : vector<8x32xf32>
    %26 = vector.broadcast %5 : vector<1x32xf32> to vector<8x32xf32>
    %27 = arith.addf %25, %26 : vector<8x32xf32>
    %cst_13 = arith.constant dense<0.000000e+00> : vector<16xf32>
    %28 = vector.multi_reduction <add>, %3, %cst_13 [1] : vector<16x32xf32> to vector<16xf32>
    %29 = vector.shape_cast %28 : vector<16xf32> to vector<16x1xf32>
    %cst_14 = arith.constant 3.200000e+01 : f32
    %30 = vector.broadcast %cst_14 : f32 to vector<16x1xf32>
    %31 = arith.divf %29, %30 : vector<16x1xf32>
    %32 = vector.broadcast %31 : vector<16x1xf32> to vector<16x32xf32>
    %33 = arith.subf %3, %32 : vector<16x32xf32>
    %34 = arith.mulf %33, %33 : vector<16x32xf32>
    %cst_15 = arith.constant dense<0.000000e+00> : vector<16xf32>
    %35 = vector.multi_reduction <add>, %34, %cst_15 [1] : vector<16x32xf32> to vector<16xf32>
    %36 = vector.shape_cast %35 : vector<16xf32> to vector<16x1xf32>
    %cst_16 = arith.constant 3.200000e+01 : f32
    %37 = vector.broadcast %cst_16 : f32 to vector<16x1xf32>
    %38 = arith.divf %36, %37 : vector<16x1xf32>
    %39 = vector.broadcast %31 : vector<16x1xf32> to vector<16x32xf32>
    %40 = arith.subf %3, %39 : vector<16x32xf32>
    %cst_17 = arith.constant 9.99999974E-6 : f32
    %41 = vector.broadcast %cst_17 : f32 to vector<16x1xf32>
    %42 = arith.addf %38, %41 : vector<16x1xf32>
    %43 = math.rsqrt %42 : vector<16x1xf32>
    %44 = vector.broadcast %43 : vector<16x1xf32> to vector<16x32xf32>
    %45 = arith.mulf %40, %44 : vector<16x32xf32>
    %46 = vector.broadcast %4 : vector<1x32xf32> to vector<16x32xf32>
    %47 = arith.mulf %45, %46 : vector<16x32xf32>
    %48 = vector.broadcast %5 : vector<1x32xf32> to vector<16x32xf32>
    %49 = arith.addf %47, %48 : vector<16x32xf32>
    %50 = arith.truncf %27 : vector<8x32xf32> to vector<8x32xbf16>
    %51 = arith.truncf %49 : vector<16x32xf32> to vector<16x32xbf16>
    %c0_18 = arith.constant 0 : index
    %c0_19 = arith.constant 0 : index
    %52 = vector.load %arg6[%c0_18, %c0_19] : memref<32x32xbf16, #tpu.memory_space<vmem>>, vector<32x32xbf16>
    %cst_20 = arith.constant dense<0.000000e+00> : vector<8x32xf32>
    %53 = tpu.matmul %50, %52, %cst_20 {dimension_numbers = #tpu.dot_dimension_numbers<[1], [0], [0], [1], [0, 0, 1, 1], [], []>} : vector<8x32xbf16>, vector<32x32xbf16>, vector<8x32xf32> -> vector<8x32xf32>
    %c0_21 = arith.constant 0 : index
    %c0_22 = arith.constant 0 : index
    %54 = vector.load %arg7[%c0_21, %c0_22] : memref<32x32xbf16, #tpu.memory_space<vmem>>, vector<32x32xbf16>
    %cst_23 = arith.constant dense<0.000000e+00> : vector<16x32xf32>
    %55 = tpu.matmul %51, %54, %cst_23 {dimension_numbers = #tpu.dot_dimension_numbers<[1], [0], [0], [1], [0, 0, 1, 1], [], []>} : vector<16x32xbf16>, vector<32x32xbf16>, vector<16x32xf32> -> vector<16x32xf32>
    %c0_24 = arith.constant 0 : index
    %c0_25 = arith.constant 0 : index
    %56 = vector.load %arg8[%c0_24, %c0_25] : memref<32x32xbf16, #tpu.memory_space<vmem>>, vector<32x32xbf16>
    %cst_26 = arith.constant dense<0.000000e+00> : vector<16x32xf32>
    %57 = tpu.matmul %51, %56, %cst_26 {dimension_numbers = #tpu.dot_dimension_numbers<[1], [0], [0], [1], [0, 0, 1, 1], [], []>} : vector<16x32xbf16>, vector<32x32xbf16>, vector<16x32xf32> -> vector<16x32xf32>
    %cst_27 = arith.constant 0.000000e+00 : f32
    %58 = vector.broadcast %cst_27 : f32 to vector<8x32xf32>
    %59 = vector.extract_strided_slice %53 {offsets = [0, 0], sizes = [8, 8], strides = [1, 1]} : vector<8x32xf32> to vector<8x8xf32>
    %60 = arith.truncf %59 : vector<8x8xf32> to vector<8x8xbf16>
    %61 = vector.extract_strided_slice %55 {offsets = [0, 0], sizes = [16, 8], strides = [1, 1]} : vector<16x32xf32> to vector<16x8xf32>
    %62 = arith.truncf %61 : vector<16x8xf32> to vector<16x8xbf16>
    %63 = vector.extract_strided_slice %57 {offsets = [0, 0], sizes = [16, 8], strides = [1, 1]} : vector<16x32xf32> to vector<16x8xf32>
    %64 = arith.truncf %63 : vector<16x8xf32> to vector<16x8xbf16>
    %cst_28 = arith.constant dense<0.000000e+00> : vector<8x16xf32>
    %65 = tpu.matmul %60, %62, %cst_28 {dimension_numbers = #tpu.dot_dimension_numbers<[1], [1], [0], [0], [0, 0, 1, 0], [], []>} : vector<8x8xbf16>, vector<16x8xbf16>, vector<8x16xf32> -> vector<8x16xf32>
    %cst_29 = arith.constant dense<0xFF800000> : vector<8xf32>
    %66 = vector.multi_reduction <maximumf>, %65, %cst_29 [1] : vector<8x16xf32> to vector<8xf32>
    %67 = vector.shape_cast %66 : vector<8xf32> to vector<8x1xf32>
    %68 = vector.broadcast %67 : vector<8x1xf32> to vector<8x16xf32>
    %69 = arith.subf %65, %68 : vector<8x16xf32>
    %70 = math.exp %69 : vector<8x16xf32>
    %cst_30 = arith.constant dense<0.000000e+00> : vector<8xf32>
    %71 = vector.multi_reduction <add>, %70, %cst_30 [1] : vector<8x16xf32> to vector<8xf32>
    %72 = vector.shape_cast %71 : vector<8xf32> to vector<8x1xf32>
    %73 = tpu.reciprocal %72 {approx = true} : vector<8x1xf32> -> vector<8x1xf32>
    %74 = vector.broadcast %73 : vector<8x1xf32> to vector<8x16xf32>
    %75 = arith.mulf %70, %74 : vector<8x16xf32>
    %76 = arith.truncf %75 : vector<8x16xf32> to vector<8x16xbf16>
    %cst_31 = arith.constant dense<0.000000e+00> : vector<8x8xf32>
    %77 = tpu.matmul %76, %64, %cst_31 {dimension_numbers = #tpu.dot_dimension_numbers<[1], [0], [0], [1], [0, 0, 1, 1], [], []>} : vector<8x16xbf16>, vector<16x8xbf16>, vector<8x8xf32> -> vector<8x8xf32>
    %78 = arith.truncf %77 : vector<8x8xf32> to vector<8x8xbf16>
    %c0_32 = arith.constant 0 : index
    %c0_33 = arith.constant 0 : index
    %c0_34 = arith.constant 0 : index
    %79 = vector.load %arg9[%c0_32, %c0_33, %c0_34] : memref<4x8x32xbf16, #tpu.memory_space<vmem>>, vector<1x8x32xbf16>
    %80 = vector.shape_cast %79 : vector<1x8x32xbf16> to vector<8x32xbf16>
    %cst_35 = arith.constant dense<0.000000e+00> : vector<8x32xf32>
    %81 = tpu.matmul %78, %80, %cst_35 {dimension_numbers = #tpu.dot_dimension_numbers<[1], [0], [0], [1], [0, 0, 1, 1], [], []>} : vector<8x8xbf16>, vector<8x32xbf16>, vector<8x32xf32> -> vector<8x32xf32>
    %82 = arith.addf %58, %81 : vector<8x32xf32>
    %83 = vector.extract_strided_slice %53 {offsets = [0, 8], sizes = [8, 8], strides = [1, 1]} : vector<8x32xf32> to vector<8x8xf32>
    %84 = arith.truncf %83 : vector<8x8xf32> to vector<8x8xbf16>
    %85 = vector.extract_strided_slice %55 {offsets = [0, 8], sizes = [16, 8], strides = [1, 1]} : vector<16x32xf32> to vector<16x8xf32>
    %86 = arith.truncf %85 : vector<16x8xf32> to vector<16x8xbf16>
    %87 = vector.extract_strided_slice %57 {offsets = [0, 8], sizes = [16, 8], strides = [1, 1]} : vector<16x32xf32> to vector<16x8xf32>
    %88 = arith.truncf %87 : vector<16x8xf32> to vector<16x8xbf16>
    %cst_36 = arith.constant dense<0.000000e+00> : vector<8x16xf32>
    %89 = tpu.matmul %84, %86, %cst_36 {dimension_numbers = #tpu.dot_dimension_numbers<[1], [1], [0], [0], [0, 0, 1, 0], [], []>} : vector<8x8xbf16>, vector<16x8xbf16>, vector<8x16xf32> -> vector<8x16xf32>
    %cst_37 = arith.constant dense<0xFF800000> : vector<8xf32>
    %90 = vector.multi_reduction <maximumf>, %89, %cst_37 [1] : vector<8x16xf32> to vector<8xf32>
    %91 = vector.shape_cast %90 : vector<8xf32> to vector<8x1xf32>
    %92 = vector.broadcast %91 : vector<8x1xf32> to vector<8x16xf32>
    %93 = arith.subf %89, %92 : vector<8x16xf32>
    %94 = math.exp %93 : vector<8x16xf32>
    %cst_38 = arith.constant dense<0.000000e+00> : vector<8xf32>
    %95 = vector.multi_reduction <add>, %94, %cst_38 [1] : vector<8x16xf32> to vector<8xf32>
    %96 = vector.shape_cast %95 : vector<8xf32> to vector<8x1xf32>
    %97 = tpu.reciprocal %96 {approx = true} : vector<8x1xf32> -> vector<8x1xf32>
    %98 = vector.broadcast %97 : vector<8x1xf32> to vector<8x16xf32>
    %99 = arith.mulf %94, %98 : vector<8x16xf32>
    %100 = arith.truncf %99 : vector<8x16xf32> to vector<8x16xbf16>
    %cst_39 = arith.constant dense<0.000000e+00> : vector<8x8xf32>
    %101 = tpu.matmul %100, %88, %cst_39 {dimension_numbers = #tpu.dot_dimension_numbers<[1], [0], [0], [1], [0, 0, 1, 1], [], []>} : vector<8x16xbf16>, vector<16x8xbf16>, vector<8x8xf32> -> vector<8x8xf32>
    %102 = arith.truncf %101 : vector<8x8xf32> to vector<8x8xbf16>
    %c1 = arith.constant 1 : index
    %c0_40 = arith.constant 0 : index
    %c0_41 = arith.constant 0 : index
    %103 = vector.load %arg9[%c1, %c0_40, %c0_41] : memref<4x8x32xbf16, #tpu.memory_space<vmem>>, vector<1x8x32xbf16>
    %104 = vector.shape_cast %103 : vector<1x8x32xbf16> to vector<8x32xbf16>
    %cst_42 = arith.constant dense<0.000000e+00> : vector<8x32xf32>
    %105 = tpu.matmul %102, %104, %cst_42 {dimension_numbers = #tpu.dot_dimension_numbers<[1], [0], [0], [1], [0, 0, 1, 1], [], []>} : vector<8x8xbf16>, vector<8x32xbf16>, vector<8x32xf32> -> vector<8x32xf32>
    %106 = arith.addf %82, %105 : vector<8x32xf32>
    %107 = vector.extract_strided_slice %53 {offsets = [0, 16], sizes = [8, 8], strides = [1, 1]} : vector<8x32xf32> to vector<8x8xf32>
    %108 = arith.truncf %107 : vector<8x8xf32> to vector<8x8xbf16>
    %109 = vector.extract_strided_slice %55 {offsets = [0, 16], sizes = [16, 8], strides = [1, 1]} : vector<16x32xf32> to vector<16x8xf32>
    %110 = arith.truncf %109 : vector<16x8xf32> to vector<16x8xbf16>
    %111 = vector.extract_strided_slice %57 {offsets = [0, 16], sizes = [16, 8], strides = [1, 1]} : vector<16x32xf32> to vector<16x8xf32>
    %112 = arith.truncf %111 : vector<16x8xf32> to vector<16x8xbf16>
    %cst_43 = arith.constant dense<0.000000e+00> : vector<8x16xf32>
    %113 = tpu.matmul %108, %110, %cst_43 {dimension_numbers = #tpu.dot_dimension_numbers<[1], [1], [0], [0], [0, 0, 1, 0], [], []>} : vector<8x8xbf16>, vector<16x8xbf16>, vector<8x16xf32> -> vector<8x16xf32>
    %cst_44 = arith.constant dense<0xFF800000> : vector<8xf32>
    %114 = vector.multi_reduction <maximumf>, %113, %cst_44 [1] : vector<8x16xf32> to vector<8xf32>
    %115 = vector.shape_cast %114 : vector<8xf32> to vector<8x1xf32>
    %116 = vector.broadcast %115 : vector<8x1xf32> to vector<8x16xf32>
    %117 = arith.subf %113, %116 : vector<8x16xf32>
    %118 = math.exp %117 : vector<8x16xf32>
    %cst_45 = arith.constant dense<0.000000e+00> : vector<8xf32>
    %119 = vector.multi_reduction <add>, %118, %cst_45 [1] : vector<8x16xf32> to vector<8xf32>
    %120 = vector.shape_cast %119 : vector<8xf32> to vector<8x1xf32>
    %121 = tpu.reciprocal %120 {approx = true} : vector<8x1xf32> -> vector<8x1xf32>
    %122 = vector.broadcast %121 : vector<8x1xf32> to vector<8x16xf32>
    %123 = arith.mulf %118, %122 : vector<8x16xf32>
    %124 = arith.truncf %123 : vector<8x16xf32> to vector<8x16xbf16>
    %cst_46 = arith.constant dense<0.000000e+00> : vector<8x8xf32>
    %125 = tpu.matmul %124, %112, %cst_46 {dimension_numbers = #tpu.dot_dimension_numbers<[1], [0], [0], [1], [0, 0, 1, 1], [], []>} : vector<8x16xbf16>, vector<16x8xbf16>, vector<8x8xf32> -> vector<8x8xf32>
    %126 = arith.truncf %125 : vector<8x8xf32> to vector<8x8xbf16>
    %c2 = arith.constant 2 : index
    %c0_47 = arith.constant 0 : index
    %c0_48 = arith.constant 0 : index
    %127 = vector.load %arg9[%c2, %c0_47, %c0_48] : memref<4x8x32xbf16, #tpu.memory_space<vmem>>, vector<1x8x32xbf16>
    %128 = vector.shape_cast %127 : vector<1x8x32xbf16> to vector<8x32xbf16>
    %cst_49 = arith.constant dense<0.000000e+00> : vector<8x32xf32>
    %129 = tpu.matmul %126, %128, %cst_49 {dimension_numbers = #tpu.dot_dimension_numbers<[1], [0], [0], [1], [0, 0, 1, 1], [], []>} : vector<8x8xbf16>, vector<8x32xbf16>, vector<8x32xf32> -> vector<8x32xf32>
    %130 = arith.addf %106, %129 : vector<8x32xf32>
    %131 = vector.extract_strided_slice %53 {offsets = [0, 24], sizes = [8, 8], strides = [1, 1]} : vector<8x32xf32> to vector<8x8xf32>
    %132 = arith.truncf %131 : vector<8x8xf32> to vector<8x8xbf16>
    %133 = vector.extract_strided_slice %55 {offsets = [0, 24], sizes = [16, 8], strides = [1, 1]} : vector<16x32xf32> to vector<16x8xf32>
    %134 = arith.truncf %133 : vector<16x8xf32> to vector<16x8xbf16>
    %135 = vector.extract_strided_slice %57 {offsets = [0, 24], sizes = [16, 8], strides = [1, 1]} : vector<16x32xf32> to vector<16x8xf32>
    %136 = arith.truncf %135 : vector<16x8xf32> to vector<16x8xbf16>
    %cst_50 = arith.constant dense<0.000000e+00> : vector<8x16xf32>
    %137 = tpu.matmul %132, %134, %cst_50 {dimension_numbers = #tpu.dot_dimension_numbers<[1], [1], [0], [0], [0, 0, 1, 0], [], []>} : vector<8x8xbf16>, vector<16x8xbf16>, vector<8x16xf32> -> vector<8x16xf32>
    %cst_51 = arith.constant dense<0xFF800000> : vector<8xf32>
    %138 = vector.multi_reduction <maximumf>, %137, %cst_51 [1] : vector<8x16xf32> to vector<8xf32>
    %139 = vector.shape_cast %138 : vector<8xf32> to vector<8x1xf32>
    %140 = vector.broadcast %139 : vector<8x1xf32> to vector<8x16xf32>
    %141 = arith.subf %137, %140 : vector<8x16xf32>
    %142 = math.exp %141 : vector<8x16xf32>
    %cst_52 = arith.constant dense<0.000000e+00> : vector<8xf32>
    %143 = vector.multi_reduction <add>, %142, %cst_52 [1] : vector<8x16xf32> to vector<8xf32>
    %144 = vector.shape_cast %143 : vector<8xf32> to vector<8x1xf32>
    %145 = tpu.reciprocal %144 {approx = true} : vector<8x1xf32> -> vector<8x1xf32>
    %146 = vector.broadcast %145 : vector<8x1xf32> to vector<8x16xf32>
    %147 = arith.mulf %142, %146 : vector<8x16xf32>
    %148 = arith.truncf %147 : vector<8x16xf32> to vector<8x16xbf16>
    %cst_53 = arith.constant dense<0.000000e+00> : vector<8x8xf32>
    %149 = tpu.matmul %148, %136, %cst_53 {dimension_numbers = #tpu.dot_dimension_numbers<[1], [0], [0], [1], [0, 0, 1, 1], [], []>} : vector<8x16xbf16>, vector<16x8xbf16>, vector<8x8xf32> -> vector<8x8xf32>
    %150 = arith.truncf %149 : vector<8x8xf32> to vector<8x8xbf16>
    %c3 = arith.constant 3 : index
    %c0_54 = arith.constant 0 : index
    %c0_55 = arith.constant 0 : index
    %151 = vector.load %arg9[%c3, %c0_54, %c0_55] : memref<4x8x32xbf16, #tpu.memory_space<vmem>>, vector<1x8x32xbf16>
    %152 = vector.shape_cast %151 : vector<1x8x32xbf16> to vector<8x32xbf16>
    %cst_56 = arith.constant dense<0.000000e+00> : vector<8x32xf32>
    %153 = tpu.matmul %150, %152, %cst_56 {dimension_numbers = #tpu.dot_dimension_numbers<[1], [0], [0], [1], [0, 0, 1, 1], [], []>} : vector<8x8xbf16>, vector<8x32xbf16>, vector<8x32xf32> -> vector<8x32xf32>
    %154 = arith.addf %130, %153 : vector<8x32xf32>
    %155 = arith.addf %1, %154 : vector<8x32xf32>
    %c0_57 = arith.constant 0 : index
    %c0_58 = arith.constant 0 : index
    %156 = vector.load %arg10[%c0_57, %c0_58] : memref<1x32xf32, #tpu.memory_space<vmem>>, vector<1x32xf32>
    %c0_59 = arith.constant 0 : index
    %c0_60 = arith.constant 0 : index
    %157 = vector.load %arg11[%c0_59, %c0_60] : memref<1x32xf32, #tpu.memory_space<vmem>>, vector<1x32xf32>
    %cst_61 = arith.constant dense<0.000000e+00> : vector<8xf32>
    %158 = vector.multi_reduction <add>, %155, %cst_61 [1] : vector<8x32xf32> to vector<8xf32>
    %159 = vector.shape_cast %158 : vector<8xf32> to vector<8x1xf32>
    %cst_62 = arith.constant 3.200000e+01 : f32
    %160 = vector.broadcast %cst_62 : f32 to vector<8x1xf32>
    %161 = arith.divf %159, %160 : vector<8x1xf32>
    %162 = vector.broadcast %161 : vector<8x1xf32> to vector<8x32xf32>
    %163 = arith.subf %155, %162 : vector<8x32xf32>
    %164 = arith.mulf %163, %163 : vector<8x32xf32>
    %cst_63 = arith.constant dense<0.000000e+00> : vector<8xf32>
    %165 = vector.multi_reduction <add>, %164, %cst_63 [1] : vector<8x32xf32> to vector<8xf32>
    %166 = vector.shape_cast %165 : vector<8xf32> to vector<8x1xf32>
    %cst_64 = arith.constant 3.200000e+01 : f32
    %167 = vector.broadcast %cst_64 : f32 to vector<8x1xf32>
    %168 = arith.divf %166, %167 : vector<8x1xf32>
    %169 = vector.broadcast %161 : vector<8x1xf32> to vector<8x32xf32>
    %170 = arith.subf %155, %169 : vector<8x32xf32>
    %cst_65 = arith.constant 9.99999974E-6 : f32
    %171 = vector.broadcast %cst_65 : f32 to vector<8x1xf32>
    %172 = arith.addf %168, %171 : vector<8x1xf32>
    %173 = math.rsqrt %172 : vector<8x1xf32>
    %174 = vector.broadcast %173 : vector<8x1xf32> to vector<8x32xf32>
    %175 = arith.mulf %170, %174 : vector<8x32xf32>
    %176 = vector.broadcast %156 : vector<1x32xf32> to vector<8x32xf32>
    %177 = arith.mulf %175, %176 : vector<8x32xf32>
    %178 = vector.broadcast %157 : vector<1x32xf32> to vector<8x32xf32>
    %179 = arith.addf %177, %178 : vector<8x32xf32>
    %180 = arith.truncf %179 : vector<8x32xf32> to vector<8x32xbf16>
    %c0_66 = arith.constant 0 : index
    %c0_67 = arith.constant 0 : index
    %181 = vector.load %arg12[%c0_66, %c0_67] : memref<32x128xbf16, #tpu.memory_space<vmem>>, vector<32x128xbf16>
    %cst_68 = arith.constant dense<0.000000e+00> : vector<8x128xf32>
    %182 = tpu.matmul %180, %181, %cst_68 {dimension_numbers = #tpu.dot_dimension_numbers<[1], [0], [0], [1], [0, 0, 1, 1], [], []>} : vector<8x32xbf16>, vector<32x128xbf16>, vector<8x128xf32> -> vector<8x128xf32>
    %c0_69 = arith.constant 0 : index
    %c0_70 = arith.constant 0 : index
    %183 = vector.load %arg13[%c0_69, %c0_70] : memref<1x128xf32, #tpu.memory_space<vmem>>, vector<1x128xf32>
    %184 = vector.broadcast %183 : vector<1x128xf32> to vector<8x128xf32>
    %185 = arith.addf %182, %184 : vector<8x128xf32>
    %cst_71 = arith.constant 0.000000e+00 : f32
    %186 = vector.broadcast %cst_71 : f32 to vector<8x128xf32>
    %187 = arith.maximumf %185, %186 : vector<8x128xf32>
    %188 = arith.truncf %187 : vector<8x128xf32> to vector<8x128xbf16>
    %c0_72 = arith.constant 0 : index
    %c0_73 = arith.constant 0 : index
    %189 = vector.load %arg14[%c0_72, %c0_73] : memref<128x32xbf16, #tpu.memory_space<vmem>>, vector<128x32xbf16>
    %cst_74 = arith.constant dense<0.000000e+00> : vector<8x32xf32>
    %190 = tpu.matmul %188, %189, %cst_74 {dimension_numbers = #tpu.dot_dimension_numbers<[1], [0], [0], [1], [0, 0, 1, 1], [], []>} : vector<8x128xbf16>, vector<128x32xbf16>, vector<8x32xf32> -> vector<8x32xf32>
    %c0_75 = arith.constant 0 : index
    %c0_76 = arith.constant 0 : index
    %191 = vector.load %arg15[%c0_75, %c0_76] : memref<1x32xf32, #tpu.memory_space<vmem>>, vector<1x32xf32>
    %192 = vector.broadcast %191 : vector<1x32xf32> to vector<8x32xf32>
    %193 = arith.addf %190, %192 : vector<8x32xf32>
    %194 = arith.addf %155, %193 : vector<8x32xf32>
    %c0_77 = arith.constant 0 : index
    %c0_78 = arith.constant 0 : index
    %c0_79 = arith.constant 0 : index
    %195 = vector.load %arg16[%c0_77, %c0_78, %c0_79] : memref<1x8x32xf32, #tpu.memory_space<vmem>>, vector<1x8x32xf32>
    %196 = vector.shape_cast %195 : vector<1x8x32xf32> to vector<8x32xf32>
    %197 = vector.shape_cast %194 : vector<8x32xf32> to vector<1x8x32xf32>
    tpu.vector_store %arg16[%c0_77, %c0_78, %c0_79], %197 {strides = array<i32>} : memref<1x8x32xf32, #tpu.memory_space<vmem>>, vector<1x8x32xf32>,
    return
  }
  func.func @transform_0(%arg0: i32, %arg1: i32) -> (i32, i32, i32) {
    %c0_i32 = arith.constant 0 : i32
    %c0_i32_0 = arith.constant 0 : i32
    return %arg0, %arg1, %c0_i32 : i32, i32, i32
  }
  func.func @transform_1(%arg0: i32, %arg1: i32) -> (i32, i32, i32) {
    %c0_i32 = arith.constant 0 : i32
    %c0_i32_0 = arith.constant 0 : i32
    %c0_i32_1 = arith.constant 0 : i32
    return %arg0, %c0_i32, %c0_i32_0 : i32, i32, i32
  }
  func.func @transform_2(%arg0: i32, %arg1: i32) -> (i32, i32) {
    %c0_i32 = arith.constant 0 : i32
    %c0_i32_0 = arith.constant 0 : i32
    %c0_i32_1 = arith.constant 0 : i32
    return %c0_i32, %c0_i32_0 : i32, i32
  }
  func.func @transform_3(%arg0: i32, %arg1: i32) -> (i32, i32) {
    %c0_i32 = arith.constant 0 : i32
    %c0_i32_0 = arith.constant 0 : i32
    %c0_i32_1 = arith.constant 0 : i32
    return %c0_i32, %c0_i32_0 : i32, i32
  }
  func.func @transform_4(%arg0: i32, %arg1: i32) -> (i32, i32) {
    %c0_i32 = arith.constant 0 : i32
    %c0_i32_0 = arith.constant 0 : i32
    %c0_i32_1 = arith.constant 0 : i32
    return %c0_i32, %c0_i32_0 : i32, i32
  }
  func.func @transform_5(%arg0: i32, %arg1: i32) -> (i32, i32) {
    %c0_i32 = arith.constant 0 : i32
    %c0_i32_0 = arith.constant 0 : i32
    %c0_i32_1 = arith.constant 0 : i32
    return %c0_i32, %c0_i32_0 : i32, i32
  }
  func.func @transform_6(%arg0: i32, %arg1: i32) -> (i32, i32) {
    %c0_i32 = arith.constant 0 : i32
    %c0_i32_0 = arith.constant 0 : i32
    %c0_i32_1 = arith.constant 0 : i32
    return %c0_i32, %c0_i32_0 : i32, i32
  }
  func.func @transform_7(%arg0: i32, %arg1: i32) -> (i32, i32, i32) {
    %c0_i32 = arith.constant 0 : i32
    %c0_i32_0 = arith.constant 0 : i32
    %c0_i32_1 = arith.constant 0 : i32
    %c0_i32_2 = arith.constant 0 : i32
    return %c0_i32, %c0_i32_0, %c0_i32_1 : i32, i32, i32
  }
  func.func @transform_8(%arg0: i32, %arg1: i32) -> (i32, i32) {
    %c0_i32 = arith.constant 0 : i32
    %c0_i32_0 = arith.constant 0 : i32
    %c0_i32_1 = arith.constant 0 : i32
    return %c0_i32, %c0_i32_0 : i32, i32
  }
  func.func @transform_9(%arg0: i32, %arg1: i32) -> (i32, i32) {
    %c0_i32 = arith.constant 0 : i32
    %c0_i32_0 = arith.constant 0 : i32
    %c0_i32_1 = arith.constant 0 : i32
    return %c0_i32, %c0_i32_0 : i32, i32
  }
  func.func @transform_10(%arg0: i32, %arg1: i32) -> (i32, i32) {
    %c0_i32 = arith.constant 0 : i32
    %c0_i32_0 = arith.constant 0 : i32
    %c0_i32_1 = arith.constant 0 : i32
    return %c0_i32, %c0_i32_0 : i32, i32
  }
  func.func @transform_11(%arg0: i32, %arg1: i32) -> (i32, i32) {
    %c0_i32 = arith.constant 0 : i32
    %c0_i32_0 = arith.constant 0 : i32
    %c0_i32_1 = arith.constant 0 : i32
    return %c0_i32, %c0_i32_0 : i32, i32
  }
  func.func @transform_12(%arg0: i32, %arg1: i32) -> (i32, i32) {
    %c0_i32 = arith.constant 0 : i32
    %c0_i32_0 = arith.constant 0 : i32
    %c0_i32_1 = arith.constant 0 : i32
    return %c0_i32, %c0_i32_0 : i32, i32
  }
  func.func @transform_13(%arg0: i32, %arg1: i32) -> (i32, i32) {
    %c0_i32 = arith.constant 0 : i32
    %c0_i32_0 = arith.constant 0 : i32
    %c0_i32_1 = arith.constant 0 : i32
    return %c0_i32, %c0_i32_0 : i32, i32
  }
  func.func @transform_14(%arg0: i32, %arg1: i32) -> (i32, i32, i32) {
    %c0_i32 = arith.constant 0 : i32
    %c0_i32_0 = arith.constant 0 : i32
    return %arg0, %arg1, %c0_i32 : i32, i32, i32
  }
}

</mosaic_0001>

<llo_original>
// kernel: tpu_custom_call.1
$region0: #{tpu_custom_call.1}
  #allocation0 [shape = 'u32[]', space=smem, size = 0x4, offset = 0x4, fixed_abs, tag = 'smem constant byte address 0x4 - core index']
  #allocation1 [shape = 'u32[144,128]{1,0:T(1,128)}', space=vmem, size = 0x12000, scoped, tag = 'internal scratch']
  %s0 = inlined_call_operand.vmem [shape: f32[2,16,32], index: 0, kind: input, shape index: {}]
  %s1 = inlined_call_operand.vmem [shape: f32[2,16,32], index: 1, kind: input, shape index: {}]
  %s2 = inlined_call_operand.vmem [shape: f32[1,32], index: 2, kind: input, shape index: {}]
  %s3 = inlined_call_operand.vmem [shape: f32[1,32], index: 3, kind: input, shape index: {}]
  %s4 = inlined_call_operand.vmem [shape: bf16[32,32], index: 4, kind: input, shape index: {}]
  %s5 = inlined_call_operand.hbm [shape: bf16[32,32], index: 5, kind: input, shape index: {}]
  %s6 = inlined_call_operand.hbm [shape: bf16[32,32], index: 6, kind: input, shape index: {}]
  %s7 = inlined_call_operand.hbm [shape: bf16[4,8,32], index: 7, kind: input, shape index: {}]
  %s8 = inlined_call_operand.hbm [shape: f32[1,32], index: 8, kind: input, shape index: {}]
  %s9 = inlined_call_operand.hbm [shape: f32[1,32], index: 9, kind: input, shape index: {}]
  %s10 = inlined_call_operand.vmem [shape: bf16[32,128], index: 10, kind: input, shape index: {}]
  %s11 = inlined_call_operand.vmem [shape: f32[1,128], index: 11, kind: input, shape index: {}]
  %s12 = inlined_call_operand.vmem [shape: bf16[128,32], index: 12, kind: input, shape index: {}]
  %s13 = inlined_call_operand.vmem [shape: f32[1,32], index: 13, kind: input, shape index: {}]
  %s14 = inlined_call_operand.hbm [shape: f32[2,16,32], index: 14, kind: output, shape index: {}]
  %s15 = sld [smem:[#allocation0]]
  $region109: #{tpu_custom_call.1} parent=0
    _
  %s17 = ssub.s32 1, %s15
  %s18 = scalar_select 0, %s17, %s15
  $region1: #{tpu_custom_call.1} parent=0
    #allocation2 [shape = 'u8[8192]{0}', space=vmem, size = 0x2000, scoped, tag = 'input window, operand 5, single buffered']
    #allocation3 [shape = 's32[2]{0}', space=sflag, size = 0x8, scoped, tag = 'scoped memory for tpu_custom_call.1']
    #allocation4 [shape = 's32[2]{0}', space=sflag, size = 0x8, scoped, tag = 'scoped memory for tpu_custom_call.1']
    #allocation5 [shape = 'u8[8192]{0}', space=vmem, size = 0x2000, scoped, tag = 'input window, operand 6, single buffered']
    #allocation6 [shape = 's32[1]{0}', space=sflag, size = 0x4, scoped, tag = 'scoped memory for tpu_custom_call.1']
    #allocation7 [shape = 'u8[8192]{0}', space=vmem, size = 0x2000, scoped, tag = 'input window, operand 7, single buffered']
    #allocation8 [shape = 'u8[512]{0}', space=vmem, size = 0x400, scoped, tag = 'input window, operand 8, single buffered']
    #allocation9 [shape = 's32[1]{0}', space=sflag, size = 0x4, scoped, tag = 'scoped memory for tpu_custom_call.1']
    #allocation10 [shape = 'u8[512]{0}', space=vmem, size = 0x400, scoped, tag = 'input window, operand 9, single buffered']
    #allocation11 [shape = 'u8[8192]{0}', space=vmem, size = 0x2000, scoped, tag = 'output window, operand 0']
    %19 = vsyncpa [#allocation3], 0
    %20 = vsyncpa [#allocation6], 0
    %21 = vsyncpa [#allocation9], 0
    %22 = vsyncpa [#allocation4], 0
    %s23 = scalar_lea.sflag [#allocation4], 1
    %24 = vsyncpa %s23, 0
    loop: start=0, step=1, limit=6
    $region2: #{tpu_custom_call.1} parent=1 // loop_pre_header
      _
    $region3: #{tpu_custom_call.1} parent=1 // loop_header
      %s26 = sphi 0, %s30
      %p27 = scmp.ge.s32.totalorder %s26, 6
      %s33 = sphi 0, %s45
      %s34 = sphi 0, %s41
      %s35 = sphi 0, %s33
      %s36 = sphi 0, %s34
      %s37 = sphi 0, %s35
      %s38 = sphi 0, %s36
      %s50 = sphi 0, %s52
      %s53 = sphi 0, %s50
      %s54 = sphi 0, %s53
      %s70 = sphi 0, %s54
      %s76 = sphi 0, %s78
      %s79 = sphi 0, %s76
      %s80 = sphi 0, %s79
      %s96 = sphi 0, %s80
      %s100 = sphi 0, %s100
      %s102 = sphi 0, %s100
      %s103 = sphi 0, %s102
      %s117 = sphi 0, %s103
      %s121 = sphi 0, %s121
      %s123 = sphi 0, %s121
      %s124 = sphi 0, %s123
      %s138 = sphi 0, %s124
      %s142 = sphi 0, %s142
      %s144 = sphi 0, %s142
      %s145 = sphi 0, %s144
      %s159 = sphi 0, %s145
      %s163 = sphi 0, %s163
      %s165 = sphi 0, %s163
      %s166 = sphi 0, %s165
      %s180 = sphi 0, %s166
      %s184 = sphi 0, %s184
      %s186 = sphi 0, %s184
      %s187 = sphi 0, %s186
      %s201 = sphi 0, %s187
      %s205 = sphi 0, %s205
      %s207 = sphi 0, %s205
      %s208 = sphi 0, %s207
      %s222 = sphi 0, %s208
      %s226 = sphi 0, %s226
      %s228 = sphi 0, %s226
      %s229 = sphi 0, %s228
      %s243 = sphi 0, %s229
      %s247 = sphi 0, %s247
      %s249 = sphi 0, %s247
      %s250 = sphi 0, %s249
      %s264 = sphi 0, %s250
      %s268 = sphi 0, %s268
      %s270 = sphi 0, %s268
      %s271 = sphi 0, %s270
      %s285 = sphi 0, %s271
      %s289 = sphi 0, %s289
      %s291 = sphi 0, %s289
      %s292 = sphi 0, %s291
      %s306 = sphi 0, %s292
      %s310 = sphi 0, %s310
      %s312 = sphi 0, %s310
      %s313 = sphi 0, %s312
      %s327 = sphi 0, %s313
      %s331 = sphi 0, %s331
      %s333 = sphi 0, %s331
      %s334 = sphi 0, %s333
      %s348 = sphi 0, %s334
      %s356 = sphi 0, %s358
      %s359 = sphi 0, %s356
      %s360 = sphi 0, %s359
      %s376 = sphi 0, %s360
    $region4: #{tpu_custom_call.1} parent=1 // loop_header_branch
      %29 = sbr.rel (%p27) target = $region8
    $region5: #{tpu_custom_call.1} parent=1 // loop_body
      %s31 = ssub.s32 %s26, 1
      %s32 = ssub.s32 %s26, 2
      %s39 = sadd.s32 1, %s34
      %p40 = scmp.ge.s32.totalorder %s39, 2
      %s41 = scalar_select %p40, 0, %s39
      %s42 = sadd.s32 1, %s33
      %s43 = scalar_select %p40, %s42, %s33
      %p44 = scmp.ge.s32.totalorder %s43, 2
      %s45 = scalar_select %p44, 0, %s43
      %s46 = ssub.s32 %s33, %s45
      %s47 = ssub.s32 %s34, %s41
      %s48 = sor.u32 %s46, %s47
      %p49 = scmp.eq.s32.totalorder %s48, 0
      %s51 = sadd.s32 %s50, 1
      %s52 = scalar_select %p49, %s50, %s51
      %p55 = pneg %p49
      %p56 = scmp.eq.s32.totalorder %s26, 3
      %p57 = por %p55, %p56
      %p58 = scmp.ne.s32.totalorder %s50, %s53
      %p59 = scmp.eq.s32.totalorder %s26, 0
      %p60 = por %p58, %p59
      %p61 = scmp.ne.s32.totalorder %s50, %s53
      %p62 = scmp.eq.s32.totalorder %s31, 3
      %p63 = por %p61, %p62
      %p64 = scmp.ne.s32.totalorder %s53, %s54
      %p65 = scmp.eq.s32.totalorder %s31, 0
      %p66 = por %p64, %p65
      %p67 = scmp.ne.s32.totalorder %s53, %s54
      %p68 = scmp.eq.s32.totalorder %s32, 3
      %p69 = por %p67, %p68
      %p71 = scmp.ne.s32.totalorder %s54, %s70
      %p72 = scmp.eq.s32.totalorder %s32, 0
      %p73 = por %p71, %p72
      %s74 = ssub.s32 %s33, %s45
      %p75 = scmp.eq.s32.totalorder %s74, 0
      %s77 = sadd.s32 %s76, 1
      %s78 = scalar_select %p75, %s76, %s77
      %p81 = pneg %p75
      %p82 = scmp.eq.s32.totalorder %s26, 3
      %p83 = por %p81, %p82
      %p84 = scmp.ne.s32.totalorder %s76, %s79
      %p85 = scmp.eq.s32.totalorder %s26, 0
      %p86 = por %p84, %p85
      %p87 = scmp.ne.s32.totalorder %s76, %s79
      %p88 = scmp.eq.s32.totalorder %s31, 3
      %p89 = por %p87, %p88
      %p90 = scmp.ne.s32.totalorder %s79, %s80
      %p91 = scmp.eq.s32.totalorder %s31, 0
      %p92 = por %p90, %p91
      %p93 = scmp.ne.s32.totalorder %s79, %s80
      %p94 = scmp.eq.s32.totalorder %s32, 3
      %p95 = por %p93, %p94
      %p97 = scmp.ne.s32.totalorder %s80, %s96
      %p98 = scmp.eq.s32.totalorder %s32, 0
      %p99 = por %p97, %p98
      %s101 = sadd.s32 %s100, 1
      %p104 = scmp.eq.s32.totalorder %s26, 3
      %p105 = scmp.ne.s32.totalorder %s100, %s102
      %p106 = scmp.eq.s32.totalorder %s26, 0
      %p107 = por %p105, %p106
      %p108 = scmp.ne.s32.totalorder %s100, %s102
      %p109 = scmp.eq.s32.totalorder %s31, 3
      %p110 = por %p108, %p109
      %p111 = scmp.ne.s32.totalorder %s102, %s103
      %p112 = scmp.eq.s32.totalorder %s31, 0
      %p113 = por %p111, %p112
      %p114 = scmp.ne.s32.totalorder %s102, %s103
      %p115 = scmp.eq.s32.totalorder %s32, 3
      %p116 = por %p114, %p115
      %p118 = scmp.ne.s32.totalorder %s103, %s117
      %p119 = scmp.eq.s32.totalorder %s32, 0
      %p120 = por %p118, %p119
      %s122 = sadd.s32 %s121, 1
      %p125 = scmp.eq.s32.totalorder %s26, 3
      %p126 = scmp.ne.s32.totalorder %s121, %s123
      %p127 = scmp.eq.s32.totalorder %s26, 0
      %p128 = por %p126, %p127
      %p129 = scmp.ne.s32.totalorder %s121, %s123
      %p130 = scmp.eq.s32.totalorder %s31, 3
      %p131 = por %p129, %p130
      %p132 = scmp.ne.s32.totalorder %s123, %s124
      %p133 = scmp.eq.s32.totalorder %s31, 0
      %p134 = por %p132, %p133
      %p135 = scmp.ne.s32.totalorder %s123, %s124
      %p136 = scmp.eq.s32.totalorder %s32, 3
      %p137 = por %p135, %p136
      %p139 = scmp.ne.s32.totalorder %s124, %s138
      %p140 = scmp.eq.s32.totalorder %s32, 0
      %p141 = por %p139, %p140
      %s143 = sadd.s32 %s142, 1
      %p146 = scmp.eq.s32.totalorder %s26, 3
      %p147 = scmp.ne.s32.totalorder %s142, %s144
      %p148 = scmp.eq.s32.totalorder %s26, 0
      %p149 = por %p147, %p148
      %p150 = scmp.ne.s32.totalorder %s142, %s144
      %p151 = scmp.eq.s32.totalorder %s31, 3
      %p152 = por %p150, %p151
      %p153 = scmp.ne.s32.totalorder %s144, %s145
      %p154 = scmp.eq.s32.totalorder %s31, 0
      %p155 = por %p153, %p154
      %p156 = scmp.ne.s32.totalorder %s144, %s145
      %p157 = scmp.eq.s32.totalorder %s32, 3
      %p158 = por %p156, %p157
      %p160 = scmp.ne.s32.totalorder %s145, %s159
      %p161 = scmp.eq.s32.totalorder %s32, 0
      %p162 = por %p160, %p161
      %s164 = sadd.s32 %s163, 1
      %p167 = scmp.eq.s32.totalorder %s26, 3
      %p168 = scmp.ne.s32.totalorder %s163, %s165
      %p169 = scmp.eq.s32.totalorder %s26, 0
      %p170 = por %p168, %p169
      %p171 = scmp.ne.s32.totalorder %s163, %s165
      %p172 = scmp.eq.s32.totalorder %s31, 3
      %p173 = por %p171, %p172
      %p174 = scmp.ne.s32.totalorder %s165, %s166
      %p175 = scmp.eq.s32.totalorder %s31, 0
      %p176 = por %p174, %p175
      %p177 = scmp.ne.s32.totalorder %s165, %s166
      %p178 = scmp.eq.s32.totalorder %s32, 3
      %p179 = por %p177, %p178
      %p181 = scmp.ne.s32.totalorder %s166, %s180
      %p182 = scmp.eq.s32.totalorder %s32, 0
      %p183 = por %p181, %p182
      %s185 = sadd.s32 %s184, 1
      %p188 = scmp.eq.s32.totalorder %s26, 3
      %p189 = scmp.ne.s32.totalorder %s184, %s186
      %p190 = scmp.eq.s32.totalorder %s26, 0
      %p191 = por %p189, %p190
      %p192 = scmp.ne.s32.totalorder %s184, %s186
      %p193 = scmp.eq.s32.totalorder %s31, 3
      %p194 = por %p192, %p193
      %p195 = scmp.ne.s32.totalorder %s186, %s187
      %p196 = scmp.eq.s32.totalorder %s31, 0
      %p197 = por %p195, %p196
      %p198 = scmp.ne.s32.totalorder %s186, %s187
      %p199 = scmp.eq.s32.totalorder %s32, 3
      %p200 = por %p198, %p199
      %p202 = scmp.ne.s32.totalorder %s187, %s201
      %p203 = scmp.eq.s32.totalorder %s32, 0
      %p204 = por %p202, %p203
      %s206 = sadd.s32 %s205, 1
      %p209 = scmp.eq.s32.totalorder %s26, 3
      %p210 = scmp.ne.s32.totalorder %s205, %s207
      %p211 = scmp.eq.s32.totalorder %s26, 0
      %p212 = por %p210, %p211
      %p213 = scmp.ne.s32.totalorder %s205, %s207
      %p214 = scmp.eq.s32.totalorder %s31, 3
      %p215 = por %p213, %p214
      %p216 = scmp.ne.s32.totalorder %s207, %s208
      %p217 = scmp.eq.s32.totalorder %s31, 0
      %p218 = por %p216, %p217
      %p219 = scmp.ne.s32.totalorder %s207, %s208
      %p220 = scmp.eq.s32.totalorder %s32, 3
      %p221 = por %p219, %p220
      %p223 = scmp.ne.s32.totalorder %s208, %s222
      %p224 = scmp.eq.s32.totalorder %s32, 0
      %p225 = por %p223, %p224
      %s227 = sadd.s32 %s226, 1
      %p230 = scmp.eq.s32.totalorder %s26, 3
      %p231 = scmp.ne.s32.totalorder %s226, %s228
      %p232 = scmp.eq.s32.totalorder %s26, 0
      %p233 = por %p231, %p232
      %p234 = scmp.ne.s32.totalorder %s226, %s228
      %p235 = scmp.eq.s32.totalorder %s31, 3
      %p236 = por %p234, %p235
      %p237 = scmp.ne.s32.totalorder %s228, %s229
      %p238 = scmp.eq.s32.totalorder %s31, 0
      %p239 = por %p237, %p238
      %p240 = scmp.ne.s32.totalorder %s228, %s229
      %p241 = scmp.eq.s32.totalorder %s32, 3
      %p242 = por %p240, %p241
      %p244 = scmp.ne.s32.totalorder %s229, %s243
      %p245 = scmp.eq.s32.totalorder %s32, 0
      %p246 = por %p244, %p245
      %s248 = sadd.s32 %s247, 1
      %p251 = scmp.eq.s32.totalorder %s26, 3
      %p252 = scmp.ne.s32.totalorder %s247, %s249
      %p253 = scmp.eq.s32.totalorder %s26, 0
      %p254 = por %p252, %p253
      %p255 = scmp.ne.s32.totalorder %s247, %s249
      %p256 = scmp.eq.s32.totalorder %s31, 3
      %p257 = por %p255, %p256
      %p258 = scmp.ne.s32.totalorder %s249, %s250
      %p259 = scmp.eq.s32.totalorder %s31, 0
      %p260 = por %p258, %p259
      %p261 = scmp.ne.s32.totalorder %s249, %s250
      %p262 = scmp.eq.s32.totalorder %s32, 3
      %p263 = por %p261, %p262
      %p265 = scmp.ne.s32.totalorder %s250, %s264
      %p266 = scmp.eq.s32.totalorder %s32, 0
      %p267 = por %p265, %p266
      %s269 = sadd.s32 %s268, 1
      %p272 = scmp.eq.s32.totalorder %s26, 3
      %p273 = scmp.ne.s32.totalorder %s268, %s270
      %p274 = scmp.eq.s32.totalorder %s26, 0
      %p275 = por %p273, %p274
      %p276 = scmp.ne.s32.totalorder %s268, %s270
      %p277 = scmp.eq.s32.totalorder %s31, 3
      %p278 = por %p276, %p277
      %p279 = scmp.ne.s32.totalorder %s270, %s271
      %p280 = scmp.eq.s32.totalorder %s31, 0
      %p281 = por %p279, %p280
      %p282 = scmp.ne.s32.totalorder %s270, %s271
      %p283 = scmp.eq.s32.totalorder %s32, 3
      %p284 = por %p282, %p283
      %p286 = scmp.ne.s32.totalorder %s271, %s285
      %p287 = scmp.eq.s32.totalorder %s32, 0
      %p288 = por %p286, %p287
      %s290 = sadd.s32 %s289, 1
      %p293 = scmp.eq.s32.totalorder %s26, 3
      %p294 = scmp.ne.s32.totalorder %s289, %s291
      %p295 = scmp.eq.s32.totalorder %s26, 0
      %p296 = por %p294, %p295
      %p297 = scmp.ne.s32.totalorder %s289, %s291
      %p298 = scmp.eq.s32.totalorder %s31, 3
      %p299 = por %p297, %p298
      %p300 = scmp.ne.s32.totalorder %s291, %s292
      %p301 = scmp.eq.s32.totalorder %s31, 0
      %p302 = por %p300, %p301
      %p303 = scmp.ne.s32.totalorder %s291, %s292
      %p304 = scmp.eq.s32.totalorder %s32, 3
      %p305 = por %p303, %p304
      %p307 = scmp.ne.s32.totalorder %s292, %s306
      %p308 = scmp.eq.s32.totalorder %s32, 0
      %p309 = por %p307, %p308
      %s311 = sadd.s32 %s310, 1
      %p314 = scmp.eq.s32.totalorder %s26, 3
      %p315 = scmp.ne.s32.totalorder %s310, %s312
      %p316 = scmp.eq.s32.totalorder %s26, 0
      %p317 = por %p315, %p316
      %p318 = scmp.ne.s32.totalorder %s310, %s312
      %p319 = scmp.eq.s32.totalorder %s31, 3
      %p320 = por %p318, %p319
      %p321 = scmp.ne.s32.totalorder %s312, %s313
      %p322 = scmp.eq.s32.totalorder %s31, 0
      %p323 = por %p321, %p322
      %p324 = scmp.ne.s32.totalorder %s312, %s313
      %p325 = scmp.eq.s32.totalorder %s32, 3
      %p326 = por %p324, %p325
      %p328 = scmp.ne.s32.totalorder %s313, %s327
      %p329 = scmp.eq.s32.totalorder %s32, 0
      %p330 = por %p328, %p329
      %s332 = sadd.s32 %s331, 1
      %p335 = scmp.eq.s32.totalorder %s26, 3
      %p336 = scmp.ne.s32.totalorder %s331, %s333
      %p337 = scmp.eq.s32.totalorder %s26, 0
      %p338 = por %p336, %p337
      %p339 = scmp.ne.s32.totalorder %s331, %s333
      %p340 = scmp.eq.s32.totalorder %s31, 3
      %p341 = por %p339, %p340
      %p342 = scmp.ne.s32.totalorder %s333, %s334
      %p343 = scmp.eq.s32.totalorder %s31, 0
      %p344 = por %p342, %p343
      %p345 = scmp.ne.s32.totalorder %s333, %s334
      %p346 = scmp.eq.s32.totalorder %s32, 3
      %p347 = por %p345, %p346
      %p349 = scmp.ne.s32.totalorder %s334, %s348
      %p350 = scmp.eq.s32.totalorder %s32, 0
      %p351 = por %p349, %p350
      %s352 = ssub.s32 %s33, %s45
      %s353 = ssub.s32 %s34, %s41
      %s354 = sor.u32 %s352, %s353
      %p355 = scmp.eq.s32.totalorder %s354, 0
      %s357 = sadd.s32 %s356, 1
      %s358 = scalar_select %p355, %s356, %s357
      %p361 = pneg %p355
      %p362 = scmp.eq.s32.totalorder %s26, 3
      %p363 = por %p361, %p362
      %p364 = scmp.ne.s32.totalorder %s356, %s359
      %p365 = scmp.eq.s32.totalorder %s26, 0
      %p366 = por %p364, %p365
      %p367 = scmp.ne.s32.totalorder %s356, %s359
      %p368 = scmp.eq.s32.totalorder %s31, 3
      %p369 = por %p367, %p368
      %p370 = scmp.ne.s32.totalorder %s359, %s360
      %p371 = scmp.eq.s32.totalorder %s31, 0
      %p372 = por %p370, %p371
      %p373 = scmp.ne.s32.totalorder %s359, %s360
      %p374 = scmp.eq.s32.totalorder %s32, 3
      %p375 = por %p373, %p374
      %p377 = scmp.ne.s32.totalorder %s360, %s376
      %p378 = scmp.eq.s32.totalorder %s32, 0
      %p379 = por %p377, %p378
      %p380 = scmp.le.s32.totalorder 1, %s26
      %p381 = scmp.lt.s32.totalorder %s26, 5
      %p382 = pnand %p380, %p381
      %p383 = pneg %p382
      // Predicated region
      $region9: #{tpu_custom_call.1} parent=5 // pred_check
        _
      $region10: #{tpu_custom_call.1} parent=5 // pred_check_branch
        %385 = sbr.rel (%p382) target = $region12
      $region11: #{tpu_custom_call.1} parent=5 // pred_region
        %s386 = ssub.s32 %s26, 1
        // Predicated region
        $region13: #{tpu_custom_call.1} parent=11 // pred_check
          %p387 = pneg %p113
        $region14: #{tpu_custom_call.1} parent=11 // pred_check_branch
          %389 = sbr.rel (%p387) target = $region16
        $region15: #{tpu_custom_call.1} parent=11 // pred_region
          _
        $region16: #{tpu_custom_call.1} parent=11 // pred_fallthru
          _
        // Predicated region
        $region17: #{tpu_custom_call.1} parent=11 // pred_check
          %p390 = pneg %p134
        $region18: #{tpu_custom_call.1} parent=11 // pred_check_branch
          %392 = sbr.rel (%p390) target = $region20
        $region19: #{tpu_custom_call.1} parent=11 // pred_region
          _
        $region20: #{tpu_custom_call.1} parent=11 // pred_fallthru
          _
        // Predicated region
        $region21: #{tpu_custom_call.1} parent=11 // pred_check
          %p393 = pneg %p155
        $region22: #{tpu_custom_call.1} parent=11 // pred_check_branch
          %395 = sbr.rel (%p393) target = $region24
        $region23: #{tpu_custom_call.1} parent=11 // pred_region
          _
        $region24: #{tpu_custom_call.1} parent=11 // pred_fallthru
          _
        // Predicated region
        $region25: #{tpu_custom_call.1} parent=11 // pred_check
          %p396 = pneg %p176
        $region26: #{tpu_custom_call.1} parent=11 // pred_check_branch
          %398 = sbr.rel (%p396) target = $region28
        $region27: #{tpu_custom_call.1} parent=11 // pred_region
          %s400 = ssub.s32 256, 256
          %401 = vsyncadd [#allocation3], %s400
          %s402 = sshll.u32 [#allocation2], 4
          %s403 = int_to_ptr.vmem [resolvable:$true] %s402
          %408 = dma.hbm_to_vmem [thread:$0]  %s5, 256, %s403, [#allocation3], 64, 64, 4
        $region28: #{tpu_custom_call.1} parent=11 // pred_fallthru
          _
        // Predicated region
        $region29: #{tpu_custom_call.1} parent=11 // pred_check
          %p409 = pneg %p197
        $region30: #{tpu_custom_call.1} parent=11 // pred_check_branch
          %411 = sbr.rel (%p409) target = $region32
        $region31: #{tpu_custom_call.1} parent=11 // pred_region
          %s413 = ssub.s32 256, 256
          %414 = vsyncadd [#allocation6], %s413
          %s415 = sshll.u32 [#allocation5], 4
          %s416 = int_to_ptr.vmem [resolvable:$true] %s415
          %421 = dma.hbm_to_vmem [thread:$0]  %s6, 256, %s416, [#allocation6], 64, 64, 4
        $region32: #{tpu_custom_call.1} parent=11 // pred_fallthru
          _
        // Predicated region
        $region33: #{tpu_custom_call.1} parent=11 // pred_check
          %p422 = pneg %p218
        $region34: #{tpu_custom_call.1} parent=11 // pred_check_branch
          %424 = sbr.rel (%p422) target = $region36
        $region35: #{tpu_custom_call.1} parent=11 // pred_region
          %s426 = ssub.s32 256, 256
          %427 = vsyncadd [#allocation6], %s426
          %s428 = sshll.u32 [#allocation7], 4
          %s429 = int_to_ptr.vmem [resolvable:$true] %s428
          %434 = dma.hbm_to_vmem [thread:$0]  %s7, 256, %s429, [#allocation6], 64, 64, 4
        $region36: #{tpu_custom_call.1} parent=11 // pred_fallthru
          _
        // Predicated region
        $region37: #{tpu_custom_call.1} parent=11 // pred_check
          %p435 = pneg %p239
        $region38: #{tpu_custom_call.1} parent=11 // pred_check_branch
          %437 = sbr.rel (%p435) target = $region40
        $region39: #{tpu_custom_call.1} parent=11 // pred_region
          %s439 = ssub.s32 16, 16
          %440 = vsyncadd [#allocation9], %s439
          %s442 = sshll.u32 [#allocation8], 4
          %s443 = int_to_ptr.vmem [resolvable:$true] %s442
          %445 = dma.hbm_to_vmem [thread:$0]  %s8, 16, %s443, [#allocation9]
        $region40: #{tpu_custom_call.1} parent=11 // pred_fallthru
          _
        // Predicated region
        $region41: #{tpu_custom_call.1} parent=11 // pred_check
          %p446 = pneg %p260
        $region42: #{tpu_custom_call.1} parent=11 // pred_check_branch
          %448 = sbr.rel (%p446) target = $region44
        $region43: #{tpu_custom_call.1} parent=11 // pred_region
          %s450 = ssub.s32 16, 16
          %451 = vsyncadd [#allocation9], %s450
          %s453 = sshll.u32 [#allocation10], 4
          %s454 = int_to_ptr.vmem [resolvable:$true] %s453
          %456 = dma.hbm_to_vmem [thread:$0]  %s9, 16, %s454, [#allocation9]
        $region44: #{tpu_custom_call.1} parent=11 // pred_fallthru
          _
        // Predicated region
        $region45: #{tpu_custom_call.1} parent=11 // pred_check
          %p457 = pneg %p281
        $region46: #{tpu_custom_call.1} parent=11 // pred_check_branch
          %459 = sbr.rel (%p457) target = $region48
        $region47: #{tpu_custom_call.1} parent=11 // pred_region
          _
        $region48: #{tpu_custom_call.1} parent=11 // pred_fallthru
          _
        // Predicated region
        $region49: #{tpu_custom_call.1} parent=11 // pred_check
          %p460 = pneg %p302
        $region50: #{tpu_custom_call.1} parent=11 // pred_check_branch
          %462 = sbr.rel (%p460) target = $region52
        $region51: #{tpu_custom_call.1} parent=11 // pred_region
          _
        $region52: #{tpu_custom_call.1} parent=11 // pred_fallthru
          _
        // Predicated region
        $region53: #{tpu_custom_call.1} parent=11 // pred_check
          %p463 = pneg %p323
        $region54: #{tpu_custom_call.1} parent=11 // pred_check_branch
          %465 = sbr.rel (%p463) target = $region56
        $region55: #{tpu_custom_call.1} parent=11 // pred_region
          _
        $region56: #{tpu_custom_call.1} parent=11 // pred_fallthru
          _
        // Predicated region
        $region57: #{tpu_custom_call.1} parent=11 // pred_check
          %p466 = pneg %p344
        $region58: #{tpu_custom_call.1} parent=11 // pred_check_branch
          %468 = sbr.rel (%p466) target = $region60
        $region59: #{tpu_custom_call.1} parent=11 // pred_region
          _
        $region60: #{tpu_custom_call.1} parent=11 // pred_fallthru
          _
      $region12: #{tpu_custom_call.1} parent=5 // pred_fallthru
        _
      %p469 = scmp.lt.s32.totalorder %s26, 4
      // Predicated region
      $region61: #{tpu_custom_call.1} parent=5 // pred_check
        %p470 = pneg %p469
      $region62: #{tpu_custom_call.1} parent=5 // pred_check_branch
        %472 = sbr.rel (%p470) target = $region64
      $region63: #{tpu_custom_call.1} parent=5 // pred_region
        // Predicated region
        $region65: #{tpu_custom_call.1} parent=63 // pred_check
          %p473 = pneg %p60
        $region66: #{tpu_custom_call.1} parent=63 // pred_check_branch
          %475 = sbr.rel (%p473) target = $region68
        $region67: #{tpu_custom_call.1} parent=63 // pred_region
          %p476 = scmp.lt.s32.totalorder %s33, 1
          %s477 = scalar_select %p476, %s33, 1
          %p478 = scmp.lt.s32.totalorder %s34, 1
          %s479 = scalar_select %p478, %s34, 1
          %s480 = smul.addr %s477, 2
          %s481 = sadd.s32 %s479, %s480
          %s482 = smul.addr %s481, 8
          %s483 = scalar_lea.vmem %s0, %s482
        $region68: #{tpu_custom_call.1} parent=63 // pred_fallthru
          _
        // Predicated region
        $region69: #{tpu_custom_call.1} parent=63 // pred_check
          %p484 = pneg %p86
        $region70: #{tpu_custom_call.1} parent=63 // pred_check_branch
          %486 = sbr.rel (%p484) target = $region72
        $region71: #{tpu_custom_call.1} parent=63 // pred_region
          %p487 = scmp.lt.s32.totalorder %s33, 1
          %s488 = scalar_select %p487, %s33, 1
          %s489 = smul.addr %s488, 2
          %s490 = smul.addr %s489, 8
          %s491 = scalar_lea.vmem %s1, %s490
        $region72: #{tpu_custom_call.1} parent=63 // pred_fallthru
          _
      $region64: #{tpu_custom_call.1} parent=5 // pred_fallthru
        _
      %p492 = scmp.le.s32.totalorder 1, %s26
      %p493 = scmp.lt.s32.totalorder %s26, 5
      %p494 = pnand %p492, %p493
      %p495 = pneg %p494
      // Predicated region
      $region73: #{tpu_custom_call.1} parent=5 // pred_check
        _
      $region74: #{tpu_custom_call.1} parent=5 // pred_check_branch
        %497 = sbr.rel (%p494) target = $region76
      $region75: #{tpu_custom_call.1} parent=5 // pred_region
        %s498 = ssub.s32 %s26, 1
        // Predicated region
        $region77: #{tpu_custom_call.1} parent=75 // pred_check
          %p499 = pneg %p176
        $region78: #{tpu_custom_call.1} parent=75 // pred_check_branch
          %501 = sbr.rel (%p499) target = $region80
        $region79: #{tpu_custom_call.1} parent=75 // pred_region
          %502 = dma.done [#allocation3], 256
        $region80: #{tpu_custom_call.1} parent=75 // pred_fallthru
          _
        // Predicated region
        $region81: #{tpu_custom_call.1} parent=75 // pred_check
          %p503 = pneg %p197
        $region82: #{tpu_custom_call.1} parent=75 // pred_check_branch
          %505 = sbr.rel (%p503) target = $region84
        $region83: #{tpu_custom_call.1} parent=75 // pred_region
          %506 = dma.done [#allocation6], 256
        $region84: #{tpu_custom_call.1} parent=75 // pred_fallthru
          _
        // Predicated region
        $region85: #{tpu_custom_call.1} parent=75 // pred_check
          %p507 = pneg %p218
        $region86: #{tpu_custom_call.1} parent=75 // pred_check_branch
          %509 = sbr.rel (%p507) target = $region88
        $region87: #{tpu_custom_call.1} parent=75 // pred_region
          %510 = dma.done [#allocation6], 256
        $region88: #{tpu_custom_call.1} parent=75 // pred_fallthru
          _
        // Predicated region
        $region89: #{tpu_custom_call.1} parent=75 // pred_check
          %p511 = pneg %p239
        $region90: #{tpu_custom_call.1} parent=75 // pred_check_branch
          %513 = sbr.rel (%p511) target = $region92
        $region91: #{tpu_custom_call.1} parent=75 // pred_region
          %514 = dma.done [#allocation9], 16
        $region92: #{tpu_custom_call.1} parent=75 // pred_fallthru
          _
        // Predicated region
        $region93: #{tpu_custom_call.1} parent=75 // pred_check
          %p515 = pneg %p260
        $region94: #{tpu_custom_call.1} parent=75 // pred_check_branch
          %517 = sbr.rel (%p515) target = $region96
        $region95: #{tpu_custom_call.1} parent=75 // pred_region
          %518 = dma.done [#allocation9], 16
        $region96: #{tpu_custom_call.1} parent=75 // pred_fallthru
          _
        %p519 = scmp.lt.s32.totalorder %s35, 1
        %s520 = scalar_select %p519, %s35, 1
        %p521 = scmp.lt.s32.totalorder %s36, 1
        %s522 = scalar_select %p521, %s36, 1
        %s523 = smul.addr %s520, 2
        %s524 = sadd.s32 %s522, %s523
        %s525 = smul.addr %s524, 8
        %s526 = scalar_lea.vmem %s0, %s525
        %p527 = pneg %p66
        %p528 = pneg %p63
        %p529 = scmp.lt.s32.totalorder %s35, 1
        %s530 = scalar_select %p529, %s35, 1
        %s531 = smul.addr %s530, 2
        %s532 = smul.addr %s531, 8
        %s533 = scalar_lea.vmem %s1, %s532
        %p534 = pneg %p92
        %p535 = pneg %p89
        %p536 = pneg %p113
        %p537 = pneg %p110
        %p538 = pneg %p134
        %p539 = pneg %p131
        %p540 = pneg %p155
        %p541 = pneg %p152
        %p542 = pneg %p176
        %p543 = pneg %p173
        %p544 = pneg %p197
        %p545 = pneg %p194
        %p546 = pneg %p218
        %p547 = pneg %p215
        %p548 = pneg %p239
        %p549 = pneg %p236
        %p550 = pneg %p260
        %p551 = pneg %p257
        %p552 = pneg %p281
        %p553 = pneg %p278
        %p554 = pneg %p302
        %p555 = pneg %p299
        %p556 = pneg %p323
        %p557 = pneg %p320
        %p558 = pneg %p344
        %p559 = pneg %p341
        %p560 = pneg %p372
        %p561 = pneg %p369
        %s562 = sand.u32 %s359, 1
        %s563 = scalar_lea.sflag [#allocation4], %s562
        %s564 = sand.u32 %s359, 1
        %s565 = smul.addr %s564, 8
        %s566 = scalar_lea.vmem [#allocation11], %s565
        %p567 = scmp.lt.s32.totalorder %s35, 1
        %s568 = scalar_select %p567, %s35, 1
        %p569 = scmp.lt.s32.totalorder %s36, 1
        %s570 = scalar_select %p569, %s36, 1
        %s571 = smul.addr %s568, 2
        %s572 = sadd.s32 %s570, %s571
        %s573 = smul.addr %s572, 8
        %s574 = scalar_lea.vmem %s0, %s573
        %p575 = scmp.lt.s32.totalorder %s35, 1
        %s576 = scalar_select %p575, %s35, 1
        %s577 = smul.addr %s576, 2
        %s578 = smul.addr %s577, 8
        %s579 = scalar_lea.vmem %s1, %s578
        %v581 = vld [vmem:[%s574] sm:$0xff]
        %v582 = vld [vmem:[%s579] sm:$0xff]
        %v583 = vld [vmem:[%s579 + $0x8] sm:$0xff]
        %v584 = vld [vmem:[%s2] sm:$0x1]
        %v585 = vld [vmem:[%s3] sm:$0x1]
        %vm586 = vcmask 261120
        %v587 = vsel %vm586, %v581, 0.0
        %588 = vadd.xlane.f32.xlu0 %v587
        %v589 = vpop.xlane.xlu0 %588
        %v590 = vrcp.pop 32.0
        %v591 = vmul.f32 %v589, %v590
        %v592 = vsub.f32 %v581, %v591
        %v593 = vmul.f32 %v592, %v592
        %v594 = vsel %vm586, %v593, 0.0
        %595 = vadd.xlane.f32.xlu0 %v594
        %v596 = vpop.xlane.xlu0 %595
        %v597 = vmul.f32 %v596, %v590
        %v598 = vadd.f32 %v597, 1e-05
        %v599 = vrsqrt.pop %v598
        %v600 = vmul.f32 %v592, %v599
        %v602 = vlaneseq
        %v603 = vshrl.u32 %v602, 7
        %v604 = vsub.s32 0, %v603
        %v605 = vrot.slane %v584, %v604
        %v607 = vmul.f32 %v600, %v605
        %v609 = vlaneseq
        %v610 = vshrl.u32 %v609, 7
        %v611 = vsub.s32 0, %v610
        %v612 = vrot.slane %v585, %v611
        %v614 = vadd.f32 %v607, %v612
        %v615 = vsel %vm586, %v582, 0.0
        %616 = vadd.xlane.f32.xlu0 %v615
        %v617 = vpop.xlane.xlu0 %616
        %v618 = vsel %vm586, %v583, 0.0
        %619 = vadd.xlane.f32.xlu0 %v618
        %v620 = vpop.xlane.xlu0 %619
        %v621 = vmul.f32 %v617, %v590
        %v622 = vmul.f32 %v620, %v590
        %v623 = vsub.f32 %v582, %v621
        %v624 = vsub.f32 %v583, %v622
        %v625 = vmul.f32 %v623, %v623
        %v626 = vmul.f32 %v624, %v624
        %v627 = vsel %vm586, %v625, 0.0
        %628 = vadd.xlane.f32.xlu0 %v627
        %v629 = vpop.xlane.xlu0 %628
        %v630 = vsel %vm586, %v626, 0.0
        %631 = vadd.xlane.f32.xlu0 %v630
        %v632 = vpop.xlane.xlu0 %631
        %v633 = vmul.f32 %v629, %v590
        %v634 = vmul.f32 %v632, %v590
        %v635 = vadd.f32 %v633, 1e-05
        %v636 = vadd.f32 %v634, 1e-05
        %v637 = vrsqrt.pop %v635
        %v638 = vrsqrt.pop %v636
        %v639 = vmul.f32 %v623, %v637
        %v640 = vmul.f32 %v624, %v638
        %v641 = vmul.f32 %v639, %v605
        %v642 = vmul.f32 %v640, %v605
        %v643 = vadd.f32 %v641, %v612
        %v644 = vadd.f32 %v642, %v612
        %v645 = vpack.c.bf16 %v614, %v614
        %v646 = vpack.c.bf16 %v644, %v643
        %v647 = vld [vmem:[%s4] sm:$0xf]
        %v648 = vld [vmem:[%s4 + $0x4] sm:$0xf]
        %v649 = vld [vmem:[%s4 + $0x8] sm:$0xf]
        %v650 = vld [vmem:[%s4 + $0xc] sm:$0xf]
        %v655 = vunpack.c.l.b16 %v647
        %v656 = vunpack.c.l.b16 %v648
        %v657 = vunpack.c.l.b16 %v649
        %v658 = vunpack.c.l.b16 %v650
        %v659 = vpack.c.b16 %v656, %v655
        %v660 = vpack.c.b16 %v658, %v657
        %v664 = vsel %vm586, %v645, 0
        %666 = vmatprep.subr.bf16.mxu0 0
        %667 = vmatpush1.bf16.msra.mxu0 %v659
        %668 = vmatprep.subr.bf16.mxu0 0
        %669 = vmatpush1.bf16.msra.mxu0 %v660
        %670 = vmatprep.subr.bf16.mxu0 0
        %671 = vmatpush1.bf16.msra.mxu0 0
        %672 = vmatprep.subr.bf16.mxu0 0
        %673 = vmatpush1.bf16.msra.mxu0 0
        %674 = vmatprep.subr.bf16.mxu0 0
        %675 = vmatpush1.bf16.msra.mxu0 0
        %676 = vmatprep.subr.bf16.mxu0 0
        %677 = vmatpush1.bf16.msra.mxu0 0
        %678 = vmatprep.subr.bf16.mxu0 0
        %679 = vmatpush1.bf16.msra.mxu0 0
        %680 = vmatprep.subr.bf16.mxu0 0
        %681 = vmatpush1.bf16.msra.mxu0 0
        %682 = vmatprep.subr.bf16.mxu0 0
        %683 = vmatpush1.bf16.msra.mxu0 0
        %684 = vmatprep.subr.bf16.mxu0 0
        %685 = vmatpush1.bf16.msra.mxu0 0
        %686 = vmatprep.subr.bf16.mxu0 0
        %687 = vmatpush1.bf16.msra.mxu0 0
        %688 = vmatprep.subr.bf16.mxu0 0
        %689 = vmatpush1.bf16.msra.mxu0 0
        %690 = vmatprep.subr.bf16.mxu0 0
        %691 = vmatpush1.bf16.msra.mxu0 0
        %692 = vmatprep.subr.bf16.mxu0 0
        %693 = vmatpush1.bf16.msra.mxu0 0
        %694 = vmatprep.subr.bf16.mxu0 0
        %695 = vmatpush1.bf16.msra.mxu0 0
        %696 = vmatprep.subr.bf16.mxu0 0
        %697 = vmatpush1.bf16.msra.mxu0 0
        %698 = vmatprep.mubr.bf16.mxu0 0
        %699 = vmatmul.mubr.bf16.gmra.mrb[0].mxu0 %v664
        %v700 = vpop.f32.mrb[0].mxu0
        %v701 = vadd.f32 0.0, %v700
        %v702 = vpop.f32.mrb[0].mxu0
        %v703 = vpop.f32.mrb[0].mxu0
        %v704 = vpop.f32.mrb[0].mxu0
        %705 = vdwg.mxu0
        %v706 = vld [vmem:[#allocation2] sm:$0xf]
        %v707 = vld [vmem:[#allocation2 + $0x4] sm:$0xf]
        %v708 = vld [vmem:[#allocation2 + $0x8] sm:$0xf]
        %v709 = vld [vmem:[#allocation2 + $0xc] sm:$0xf]
        %v714 = vunpack.c.l.b16 %v706
        %v715 = vunpack.c.l.b16 %v707
        %v716 = vunpack.c.l.b16 %v708
        %v717 = vunpack.c.l.b16 %v709
        %v718 = vpack.c.b16 %v715, %v714
        %v719 = vpack.c.b16 %v717, %v716
        %v723 = vsel %vm586, %v646, 0
        %725 = vmatprep.subr.bf16.mxu0 0
        %726 = vmatpush1.bf16.msra.mxu0 %v718
        %727 = vmatprep.subr.bf16.mxu0 0
        %728 = vmatpush1.bf16.msra.mxu0 %v719
        %729 = vmatprep.subr.bf16.mxu0 0
        %730 = vmatpush1.bf16.msra.mxu0 0
        %731 = vmatprep.subr.bf16.mxu0 0
        %732 = vmatpush1.bf16.msra.mxu0 0
        %733 = vmatprep.subr.bf16.mxu0 0
        %734 = vmatpush1.bf16.msra.mxu0 0
        %735 = vmatprep.subr.bf16.mxu0 0
        %736 = vmatpush1.bf16.msra.mxu0 0
        %737 = vmatprep.subr.bf16.mxu0 0
        %738 = vmatpush1.bf16.msra.mxu0 0
        %739 = vmatprep.subr.bf16.mxu0 0
        %740 = vmatpush1.bf16.msra.mxu0 0
        %741 = vmatprep.subr.bf16.mxu0 0
        %742 = vmatpush1.bf16.msra.mxu0 0
        %743 = vmatprep.subr.bf16.mxu0 0
        %744 = vmatpush1.bf16.msra.mxu0 0
        %745 = vmatprep.subr.bf16.mxu0 0
        %746 = vmatpush1.bf16.msra.mxu0 0
        %747 = vmatprep.subr.bf16.mxu0 0
        %748 = vmatpush1.bf16.msra.mxu0 0
        %749 = vmatprep.subr.bf16.mxu0 0
        %750 = vmatpush1.bf16.msra.mxu0 0
        %751 = vmatprep.subr.bf16.mxu0 0
        %752 = vmatpush1.bf16.msra.mxu0 0
        %753 = vmatprep.subr.bf16.mxu0 0
        %754 = vmatpush1.bf16.msra.mxu0 0
        %755 = vmatprep.subr.bf16.mxu0 0
        %756 = vmatpush1.bf16.msra.mxu0 0
        %757 = vmatprep.mubr.bf16.mxu0 0
        %758 = vmatmul.mubr.bf16.gmra.mrb[0].mxu0 %v723
        %v759 = vpop.f32.mrb[0].mxu0
        %v760 = vadd.f32 0.0, %v759
        %v761 = vpop.f32.mrb[0].mxu0
        %v762 = vpop.f32.mrb[0].mxu0
        %v763 = vadd.f32 0.0, %v762
        %v764 = vpop.f32.mrb[0].mxu0
        %765 = vdwg.mxu0
        %v766 = vld [vmem:[#allocation5] sm:$0xf]
        %v767 = vld [vmem:[#allocation5 + $0x4] sm:$0xf]
        %v768 = vld [vmem:[#allocation5 + $0x8] sm:$0xf]
        %v769 = vld [vmem:[#allocation5 + $0xc] sm:$0xf]
        %v774 = vunpack.c.l.b16 %v766
        %v775 = vunpack.c.l.b16 %v767
        %v776 = vunpack.c.l.b16 %v768
        %v777 = vunpack.c.l.b16 %v769
        %v778 = vpack.c.b16 %v775, %v774
        %v779 = vpack.c.b16 %v777, %v776
        %782 = vmatprep.subr.bf16.mxu0 0
        %783 = vmatpush1.bf16.msra.mxu0 %v778
        %784 = vmatprep.subr.bf16.mxu0 0
        %785 = vmatpush1.bf16.msra.mxu0 %v779
        %786 = vmatprep.subr.bf16.mxu0 0
        %787 = vmatpush1.bf16.msra.mxu0 0
        %788 = vmatprep.subr.bf16.mxu0 0
        %789 = vmatpush1.bf16.msra.mxu0 0
        %790 = vmatprep.subr.bf16.mxu0 0
        %791 = vmatpush1.bf16.msra.mxu0 0
        %792 = vmatprep.subr.bf16.mxu0 0
        %793 = vmatpush1.bf16.msra.mxu0 0
        %794 = vmatprep.subr.bf16.mxu0 0
        %795 = vmatpush1.bf16.msra.mxu0 0
        %796 = vmatprep.subr.bf16.mxu0 0
        %797 = vmatpush1.bf16.msra.mxu0 0
        %798 = vmatprep.subr.bf16.mxu0 0
        %799 = vmatpush1.bf16.msra.mxu0 0
        %800 = vmatprep.subr.bf16.mxu0 0
        %801 = vmatpush1.bf16.msra.mxu0 0
        %802 = vmatprep.subr.bf16.mxu0 0
        %803 = vmatpush1.bf16.msra.mxu0 0
        %804 = vmatprep.subr.bf16.mxu0 0
        %805 = vmatpush1.bf16.msra.mxu0 0
        %806 = vmatprep.subr.bf16.mxu0 0
        %807 = vmatpush1.bf16.msra.mxu0 0
        %808 = vmatprep.subr.bf16.mxu0 0
        %809 = vmatpush1.bf16.msra.mxu0 0
        %810 = vmatprep.subr.bf16.mxu0 0
        %811 = vmatpush1.bf16.msra.mxu0 0
        %812 = vmatprep.subr.bf16.mxu0 0
        %813 = vmatpush1.bf16.msra.mxu0 0
        %814 = vmatprep.mubr.bf16.mxu0 0
        %815 = vmatmul.mubr.bf16.gmra.mrb[0].mxu0 %v723
        %v816 = vpop.f32.mrb[0].mxu0
        %v817 = vadd.f32 0.0, %v816
        %v818 = vpop.f32.mrb[0].mxu0
        %v819 = vpop.f32.mrb[0].mxu0
        %v820 = vadd.f32 0.0, %v819
        %v821 = vpop.f32.mrb[0].mxu0
        %822 = vdwg.mxu0
        %v823 = vpack.c.bf16 %v701, %v701
        %v824 = vpack.c.bf16 %v763, %v760
        %v825 = vpack.c.bf16 %v820, %v817
        %vm826 = vcmask 64512
        %v828 = vsel %vm826, %v823, 0
        %v831 = vsel %vm826, %v824, 0
        %833 = vmatprep.subr.bf16.mxu0 0
        %834 = vmatpush1.bf16.xpose.msra.mxu0 %v831
        %835 = vmatprep.subr.bf16.mxu0 0
        %836 = vmatpush1.bf16.xpose.msra.mxu0 0
        %837 = vmatprep.subr.bf16.mxu0 0
        %838 = vmatpush1.bf16.xpose.msra.mxu0 0
        %839 = vmatprep.subr.bf16.mxu0 0
        %840 = vmatpush1.bf16.xpose.msra.mxu0 0
        %841 = vmatprep.subr.bf16.mxu0 0
        %842 = vmatpush1.bf16.xpose.msra.mxu0 0
        %843 = vmatprep.subr.bf16.mxu0 0
        %844 = vmatpush1.bf16.xpose.msra.mxu0 0
        %845 = vmatprep.subr.bf16.mxu0 0
        %846 = vmatpush1.bf16.xpose.msra.mxu0 0
        %847 = vmatprep.subr.bf16.mxu0 0
        %848 = vmatpush1.bf16.xpose.msra.mxu0 0
        %849 = vmatprep.subr.bf16.mxu0 0
        %850 = vmatpush1.bf16.xpose.msra.mxu0 0
        %851 = vmatprep.subr.bf16.mxu0 0
        %852 = vmatpush1.bf16.xpose.msra.mxu0 0
        %853 = vmatprep.subr.bf16.mxu0 0
        %854 = vmatpush1.bf16.xpose.msra.mxu0 0
        %855 = vmatprep.subr.bf16.mxu0 0
        %856 = vmatpush1.bf16.xpose.msra.mxu0 0
        %857 = vmatprep.subr.bf16.mxu0 0
        %858 = vmatpush1.bf16.xpose.msra.mxu0 0
        %859 = vmatprep.subr.bf16.mxu0 0
        %860 = vmatpush1.bf16.xpose.msra.mxu0 0
        %861 = vmatprep.subr.bf16.mxu0 0
        %862 = vmatpush1.bf16.xpose.msra.mxu0 0
        %863 = vmatprep.subr.bf16.mxu0 0
        %864 = vmatpush1.bf16.xpose.msra.mxu0 0
        %865 = vmatprep.mubr.bf16.mxu0 0
        %866 = vmatmul.mubr.bf16.gmra.mrb[0].mxu0 %v828
        %v867 = vpop.f32.mrb[0].mxu0
        %v868 = vadd.f32 0.0, %v867
        %v869 = vpop.f32.mrb[0].mxu0
        %v870 = vpop.f32.mrb[0].mxu0
        %v871 = vpop.f32.mrb[0].mxu0
        %872 = vdwg.mxu0
        %vm873 = vcmask 130048
        %v874 = vsel %vm873, %v868, -inf
        %875 = vmax.xlane.f32.xlu0 %v874
        %v876 = vpop.xlane.xlu0 %875
        %v877 = vsub.f32 %v868, %v876
        %v878 = vmul.f32 %v877, 1.442695
        %v879 = vpow.pop %v878
        %v880 = vsel %vm873, %v879, 0.0
        %881 = vadd.xlane.f32.xlu0 %v880
        %v882 = vpop.xlane.xlu0 %881
        %v883 = vrcp.pop %v882
        %v884 = vmul.f32 %v879, %v883
        %v885 = vpack.c.bf16 %v884, %v884
        %v887 = vsel %vm873, %v885, 0
        %889 = vmatprep.subr.bf16.mxu0 0
        %890 = vmatpush1.bf16.msra.mxu0 %v825
        %891 = vmatprep.subr.bf16.mxu0 0
        %892 = vmatpush1.bf16.msra.mxu0 0
        %893 = vmatprep.subr.bf16.mxu0 0
        %894 = vmatpush1.bf16.msra.mxu0 0
        %895 = vmatprep.subr.bf16.mxu0 0
        %896 = vmatpush1.bf16.msra.mxu0 0
        %897 = vmatprep.subr.bf16.mxu0 0
        %898 = vmatpush1.bf16.msra.mxu0 0
        %899 = vmatprep.subr.bf16.mxu0 0
        %900 = vmatpush1.bf16.msra.mxu0 0
        %901 = vmatprep.subr.bf16.mxu0 0
        %902 = vmatpush1.bf16.msra.mxu0 0
        %903 = vmatprep.subr.bf16.mxu0 0
        %904 = vmatpush1.bf16.msra.mxu0 0
        %905 = vmatprep.subr.bf16.mxu0 0
        %906 = vmatpush1.bf16.msra.mxu0 0
        %907 = vmatprep.subr.bf16.mxu0 0
        %908 = vmatpush1.bf16.msra.mxu0 0
        %909 = vmatprep.subr.bf16.mxu0 0
        %910 = vmatpush1.bf16.msra.mxu0 0
        %911 = vmatprep.subr.bf16.mxu0 0
        %912 = vmatpush1.bf16.msra.mxu0 0
        %913 = vmatprep.subr.bf16.mxu0 0
        %914 = vmatpush1.bf16.msra.mxu0 0
        %915 = vmatprep.subr.bf16.mxu0 0
        %916 = vmatpush1.bf16.msra.mxu0 0
        %917 = vmatprep.subr.bf16.mxu0 0
        %918 = vmatpush1.bf16.msra.mxu0 0
        %919 = vmatprep.subr.bf16.mxu0 0
        %920 = vmatpush1.bf16.msra.mxu0 0
        %921 = vmatprep.mubr.bf16.mxu0 0
        %922 = vmatmul.mubr.bf16.gmra.mrb[0].mxu0 %v887
        %v923 = vpop.f32.mrb[0].mxu0
        %v924 = vadd.f32 0.0, %v923
        %v925 = vpop.f32.mrb[0].mxu0
        %v926 = vpop.f32.mrb[0].mxu0
        %v927 = vpop.f32.mrb[0].mxu0
        %928 = vdwg.mxu0
        %v929 = vpack.c.bf16 %v924, %v924
        %v930 = vld [vmem:[#allocation7] sm:$0xf]
        %932 = vrot.lane.b32.xlu0 %v823, 120
        %v933 = vpop.permute.xlu0 %932
        %935 = vrot.lane.b32.xlu0 %v824, 120
        %v936 = vpop.permute.xlu0 %935
        %v938 = vsel %vm826, %v933, 0
        %v941 = vsel %vm826, %v936, 0
        %943 = vmatprep.subr.bf16.mxu0 0
        %944 = vmatpush1.bf16.xpose.msra.mxu0 %v941
        %945 = vmatprep.subr.bf16.mxu0 0
        %946 = vmatpush1.bf16.xpose.msra.mxu0 0
        %947 = vmatprep.subr.bf16.mxu0 0
        %948 = vmatpush1.bf16.xpose.msra.mxu0 0
        %949 = vmatprep.subr.bf16.mxu0 0
        %950 = vmatpush1.bf16.xpose.msra.mxu0 0
        %951 = vmatprep.subr.bf16.mxu0 0
        %952 = vmatpush1.bf16.xpose.msra.mxu0 0
        %953 = vmatprep.subr.bf16.mxu0 0
        %954 = vmatpush1.bf16.xpose.msra.mxu0 0
        %955 = vmatprep.subr.bf16.mxu0 0
        %956 = vmatpush1.bf16.xpose.msra.mxu0 0
        %957 = vmatprep.subr.bf16.mxu0 0
        %958 = vmatpush1.bf16.xpose.msra.mxu0 0
        %959 = vmatprep.subr.bf16.mxu0 0
        %960 = vmatpush1.bf16.xpose.msra.mxu0 0
        %961 = vmatprep.subr.bf16.mxu0 0
        %962 = vmatpush1.bf16.xpose.msra.mxu0 0
        %963 = vmatprep.subr.bf16.mxu0 0
        %964 = vmatpush1.bf16.xpose.msra.mxu0 0
        %965 = vmatprep.subr.bf16.mxu0 0
        %966 = vmatpush1.bf16.xpose.msra.mxu0 0
        %967 = vmatprep.subr.bf16.mxu0 0
        %968 = vmatpush1.bf16.xpose.msra.mxu0 0
        %969 = vmatprep.subr.bf16.mxu0 0
        %970 = vmatpush1.bf16.xpose.msra.mxu0 0
        %971 = vmatprep.subr.bf16.mxu0 0
        %972 = vmatpush1.bf16.xpose.msra.mxu0 0
        %973 = vmatprep.subr.bf16.mxu0 0
        %974 = vmatpush1.bf16.xpose.msra.mxu0 0
        %975 = vmatprep.mubr.bf16.mxu0 0
        %976 = vmatmul.mubr.bf16.gmra.mrb[0].mxu0 %v938
        %v977 = vpop.f32.mrb[0].mxu0
        %v978 = vadd.f32 0.0, %v977
        %v979 = vpop.f32.mrb[0].mxu0
        %v980 = vpop.f32.mrb[0].mxu0
        %v981 = vpop.f32.mrb[0].mxu0
        %982 = vdwg.mxu0
        %v983 = vsel %vm873, %v978, -inf
        %984 = vmax.xlane.f32.xlu0 %v983
        %v985 = vpop.xlane.xlu0 %984
        %v986 = vsub.f32 %v978, %v985
        %v987 = vmul.f32 %v986, 1.442695
        %v988 = vpow.pop %v987
        %v989 = vsel %vm873, %v988, 0.0
        %990 = vadd.xlane.f32.xlu0 %v989
        %v991 = vpop.xlane.xlu0 %990
        %v992 = vrcp.pop %v991
        %v993 = vmul.f32 %v988, %v992
        %v994 = vpack.c.bf16 %v993, %v993
        %996 = vrot.lane.b32.xlu0 %v825, 120
        %v997 = vpop.permute.xlu0 %996
        %v1000 = vsel %vm873, %v994, 0
        %1002 = vmatprep.subr.bf16.mxu0 0
        %1003 = vmatpush1.bf16.msra.mxu0 %v997
        %1004 = vmatprep.subr.bf16.mxu0 0
        %1005 = vmatpush1.bf16.msra.mxu0 0
        %1006 = vmatprep.subr.bf16.mxu0 0
        %1007 = vmatpush1.bf16.msra.mxu0 0
        %1008 = vmatprep.subr.bf16.mxu0 0
        %1009 = vmatpush1.bf16.msra.mxu0 0
        %1010 = vmatprep.subr.bf16.mxu0 0
        %1011 = vmatpush1.bf16.msra.mxu0 0
        %1012 = vmatprep.subr.bf16.mxu0 0
        %1013 = vmatpush1.bf16.msra.mxu0 0
        %1014 = vmatprep.subr.bf16.mxu0 0
        %1015 = vmatpush1.bf16.msra.mxu0 0
        %1016 = vmatprep.subr.bf16.mxu0 0
        %1017 = vmatpush1.bf16.msra.mxu0 0
        %1018 = vmatprep.subr.bf16.mxu0 0
        %1019 = vmatpush1.bf16.msra.mxu0 0
        %1020 = vmatprep.subr.bf16.mxu0 0
        %1021 = vmatpush1.bf16.msra.mxu0 0
        %1022 = vmatprep.subr.bf16.mxu0 0
        %1023 = vmatpush1.bf16.msra.mxu0 0
        %1024 = vmatprep.subr.bf16.mxu0 0
        %1025 = vmatpush1.bf16.msra.mxu0 0
        %1026 = vmatprep.subr.bf16.mxu0 0
        %1027 = vmatpush1.bf16.msra.mxu0 0
        %1028 = vmatprep.subr.bf16.mxu0 0
        %1029 = vmatpush1.bf16.msra.mxu0 0
        %1030 = vmatprep.subr.bf16.mxu0 0
        %1031 = vmatpush1.bf16.msra.mxu0 0
        %1032 = vmatprep.subr.bf16.mxu0 0
        %1033 = vmatpush1.bf16.msra.mxu0 0
        %1034 = vmatprep.mubr.bf16.mxu0 0
        %1035 = vmatmul.mubr.bf16.gmra.mrb[0].mxu0 %v1000
        %v1036 = vpop.f32.mrb[0].mxu0
        %v1037 = vadd.f32 0.0, %v1036
        %v1038 = vpop.f32.mrb[0].mxu0
        %v1039 = vpop.f32.mrb[0].mxu0
        %v1040 = vpop.f32.mrb[0].mxu0
        %1041 = vdwg.mxu0
        %v1042 = vpack.c.bf16 %v1037, %v1037
        %s1043 = scalar_lea.vmem [#allocation7], 4
        %v1044 = vld [vmem:[%s1043] sm:$0xf]
        %v1046 = vsel %vm826, %v1042, 0
        %vm1048 = vcmask 1043456
        %v1050 = vsel %vm1048, %v1044, 0
        %1052 = vmatprep.subr.bf16.mxu0 0
        %1053 = vmatpush1.bf16.msra.mxu0 %v1050
        %1054 = vmatprep.subr.bf16.mxu0 0
        %1055 = vmatpush1.bf16.msra.mxu0 0
        %1056 = vmatprep.subr.bf16.mxu0 0
        %1057 = vmatpush1.bf16.msra.mxu0 0
        %1058 = vmatprep.subr.bf16.mxu0 0
        %1059 = vmatpush1.bf16.msra.mxu0 0
        %1060 = vmatprep.subr.bf16.mxu0 0
        %1061 = vmatpush1.bf16.msra.mxu0 0
        %1062 = vmatprep.subr.bf16.mxu0 0
        %1063 = vmatpush1.bf16.msra.mxu0 0
        %1064 = vmatprep.subr.bf16.mxu0 0
        %1065 = vmatpush1.bf16.msra.mxu0 0
        %1066 = vmatprep.subr.bf16.mxu0 0
        %1067 = vmatpush1.bf16.msra.mxu0 0
        %1068 = vmatprep.subr.bf16.mxu0 0
        %1069 = vmatpush1.bf16.msra.mxu0 0
        %1070 = vmatprep.subr.bf16.mxu0 0
        %1071 = vmatpush1.bf16.msra.mxu0 0
        %1072 = vmatprep.subr.bf16.mxu0 0
        %1073 = vmatpush1.bf16.msra.mxu0 0
        %1074 = vmatprep.subr.bf16.mxu0 0
        %1075 = vmatpush1.bf16.msra.mxu0 0
        %1076 = vmatprep.subr.bf16.mxu0 0
        %1077 = vmatpush1.bf16.msra.mxu0 0
        %1078 = vmatprep.subr.bf16.mxu0 0
        %1079 = vmatpush1.bf16.msra.mxu0 0
        %1080 = vmatprep.subr.bf16.mxu0 0
        %1081 = vmatpush1.bf16.msra.mxu0 0
        %1082 = vmatprep.subr.bf16.mxu0 0
        %1083 = vmatpush1.bf16.msra.mxu0 0
        %1084 = vmatprep.mubr.bf16.mxu0 0
        %1085 = vmatmul.mubr.bf16.gmra.mrb[0].mxu0 %v1046
        %v1086 = vpop.f32.mrb[0].mxu0
        %v1087 = vadd.f32 0.0, %v1086
        %v1088 = vpop.f32.mrb[0].mxu0
        %v1089 = vpop.f32.mrb[0].mxu0
        %v1090 = vpop.f32.mrb[0].mxu0
        %1091 = vdwg.mxu0
        %v1093 = vsel %vm826, %v929, 0
        %v1096 = vsel %vm1048, %v930, 0
        %1098 = vmatprep.subr.bf16.mxu0 0
        %1099 = vmatpush1.bf16.msra.mxu0 %v1096
        %1100 = vmatprep.subr.bf16.mxu0 0
        %1101 = vmatpush1.bf16.msra.mxu0 0
        %1102 = vmatprep.subr.bf16.mxu0 0
        %1103 = vmatpush1.bf16.msra.mxu0 0
        %1104 = vmatprep.subr.bf16.mxu0 0
        %1105 = vmatpush1.bf16.msra.mxu0 0
        %1106 = vmatprep.subr.bf16.mxu0 0
        %1107 = vmatpush1.bf16.msra.mxu0 0
        %1108 = vmatprep.subr.bf16.mxu0 0
        %1109 = vmatpush1.bf16.msra.mxu0 0
        %1110 = vmatprep.subr.bf16.mxu0 0
        %1111 = vmatpush1.bf16.msra.mxu0 0
        %1112 = vmatprep.subr.bf16.mxu0 0
        %1113 = vmatpush1.bf16.msra.mxu0 0
        %1114 = vmatprep.subr.bf16.mxu0 0
        %1115 = vmatpush1.bf16.msra.mxu0 0
        %1116 = vmatprep.subr.bf16.mxu0 0
        %1117 = vmatpush1.bf16.msra.mxu0 0
        %1118 = vmatprep.subr.bf16.mxu0 0
        %1119 = vmatpush1.bf16.msra.mxu0 0
        %1120 = vmatprep.subr.bf16.mxu0 0
        %1121 = vmatpush1.bf16.msra.mxu0 0
        %1122 = vmatprep.subr.bf16.mxu0 0
        %1123 = vmatpush1.bf16.msra.mxu0 0
        %1124 = vmatprep.subr.bf16.mxu0 0
        %1125 = vmatpush1.bf16.msra.mxu0 0
        %1126 = vmatprep.subr.bf16.mxu0 0
        %1127 = vmatpush1.bf16.msra.mxu0 0
        %1128 = vmatprep.subr.bf16.mxu0 0
        %1129 = vmatpush1.bf16.msra.mxu0 0
        %1130 = vmatprep.mubr.bf16.mxu0 0
        %1131 = vmatmul.mubr.bf16.gmra.mrb[0].mxu0 %v1093
        %v1132 = vpop.f32.mrb[0].mxu0
        %v1133 = vadd.f32 %v1087, %v1132
        %v1134 = vpop.f32.mrb[0].mxu0
        %v1135 = vpop.f32.mrb[0].mxu0
        %v1136 = vpop.f32.mrb[0].mxu0
        %1137 = vdwg.mxu0
        %1138 = vrot.lane.b32.xlu0 %v823, 112
        %v1139 = vpop.permute.xlu0 %1138
        %1140 = vrot.lane.b32.xlu0 %v824, 112
        %v1141 = vpop.permute.xlu0 %1140
        %v1143 = vsel %vm826, %v1139, 0
        %v1146 = vsel %vm826, %v1141, 0
        %1148 = vmatprep.subr.bf16.mxu0 0
        %1149 = vmatpush1.bf16.xpose.msra.mxu0 %v1146
        %1150 = vmatprep.subr.bf16.mxu0 0
        %1151 = vmatpush1.bf16.xpose.msra.mxu0 0
        %1152 = vmatprep.subr.bf16.mxu0 0
        %1153 = vmatpush1.bf16.xpose.msra.mxu0 0
        %1154 = vmatprep.subr.bf16.mxu0 0
        %1155 = vmatpush1.bf16.xpose.msra.mxu0 0
        %1156 = vmatprep.subr.bf16.mxu0 0
        %1157 = vmatpush1.bf16.xpose.msra.mxu0 0
        %1158 = vmatprep.subr.bf16.mxu0 0
        %1159 = vmatpush1.bf16.xpose.msra.mxu0 0
        %1160 = vmatprep.subr.bf16.mxu0 0
        %1161 = vmatpush1.bf16.xpose.msra.mxu0 0
        %1162 = vmatprep.subr.bf16.mxu0 0
        %1163 = vmatpush1.bf16.xpose.msra.mxu0 0
        %1164 = vmatprep.subr.bf16.mxu0 0
        %1165 = vmatpush1.bf16.xpose.msra.mxu0 0
        %1166 = vmatprep.subr.bf16.mxu0 0
        %1167 = vmatpush1.bf16.xpose.msra.mxu0 0
        %1168 = vmatprep.subr.bf16.mxu0 0
        %1169 = vmatpush1.bf16.xpose.msra.mxu0 0
        %1170 = vmatprep.subr.bf16.mxu0 0
        %1171 = vmatpush1.bf16.xpose.msra.mxu0 0
        %1172 = vmatprep.subr.bf16.mxu0 0
        %1173 = vmatpush1.bf16.xpose.msra.mxu0 0
        %1174 = vmatprep.subr.bf16.mxu0 0
        %1175 = vmatpush1.bf16.xpose.msra.mxu0 0
        %1176 = vmatprep.subr.bf16.mxu0 0
        %1177 = vmatpush1.bf16.xpose.msra.mxu0 0
        %1178 = vmatprep.subr.bf16.mxu0 0
        %1179 = vmatpush1.bf16.xpose.msra.mxu0 0
        %1180 = vmatprep.mubr.bf16.mxu0 0
        %1181 = vmatmul.mubr.bf16.gmra.mrb[0].mxu0 %v1143
        %v1182 = vpop.f32.mrb[0].mxu0
        %v1183 = vadd.f32 0.0, %v1182
        %v1184 = vpop.f32.mrb[0].mxu0
        %v1185 = vpop.f32.mrb[0].mxu0
        %v1186 = vpop.f32.mrb[0].mxu0
        %1187 = vdwg.mxu0
        %v1188 = vsel %vm873, %v1183, -inf
        %1189 = vmax.xlane.f32.xlu0 %v1188
        %v1190 = vpop.xlane.xlu0 %1189
        %v1191 = vsub.f32 %v1183, %v1190
        %v1192 = vmul.f32 %v1191, 1.442695
        %v1193 = vpow.pop %v1192
        %v1194 = vsel %vm873, %v1193, 0.0
        %1195 = vadd.xlane.f32.xlu0 %v1194
        %v1196 = vpop.xlane.xlu0 %1195
        %v1197 = vrcp.pop %v1196
        %v1198 = vmul.f32 %v1193, %v1197
        %v1199 = vpack.c.bf16 %v1198, %v1198
        %1200 = vrot.lane.b32.xlu0 %v825, 112
        %v1201 = vpop.permute.xlu0 %1200
        %v1204 = vsel %vm873, %v1199, 0
        %1206 = vmatprep.subr.bf16.mxu0 0
        %1207 = vmatpush1.bf16.msra.mxu0 %v1201
        %1208 = vmatprep.subr.bf16.mxu0 0
        %1209 = vmatpush1.bf16.msra.mxu0 0
        %1210 = vmatprep.subr.bf16.mxu0 0
        %1211 = vmatpush1.bf16.msra.mxu0 0
        %1212 = vmatprep.subr.bf16.mxu0 0
        %1213 = vmatpush1.bf16.msra.mxu0 0
        %1214 = vmatprep.subr.bf16.mxu0 0
        %1215 = vmatpush1.bf16.msra.mxu0 0
        %1216 = vmatprep.subr.bf16.mxu0 0
        %1217 = vmatpush1.bf16.msra.mxu0 0
        %1218 = vmatprep.subr.bf16.mxu0 0
        %1219 = vmatpush1.bf16.msra.mxu0 0
        %1220 = vmatprep.subr.bf16.mxu0 0
        %1221 = vmatpush1.bf16.msra.mxu0 0
        %1222 = vmatprep.subr.bf16.mxu0 0
        %1223 = vmatpush1.bf16.msra.mxu0 0
        %1224 = vmatprep.subr.bf16.mxu0 0
        %1225 = vmatpush1.bf16.msra.mxu0 0
        %1226 = vmatprep.subr.bf16.mxu0 0
        %1227 = vmatpush1.bf16.msra.mxu0 0
        %1228 = vmatprep.subr.bf16.mxu0 0
        %1229 = vmatpush1.bf16.msra.mxu0 0
        %1230 = vmatprep.subr.bf16.mxu0 0
        %1231 = vmatpush1.bf16.msra.mxu0 0
        %1232 = vmatprep.subr.bf16.mxu0 0
        %1233 = vmatpush1.bf16.msra.mxu0 0
        %1234 = vmatprep.subr.bf16.mxu0 0
        %1235 = vmatpush1.bf16.msra.mxu0 0
        %1236 = vmatprep.subr.bf16.mxu0 0
        %1237 = vmatpush1.bf16.msra.mxu0 0
        %1238 = vmatprep.mubr.bf16.mxu0 0
        %1239 = vmatmul.mubr.bf16.gmra.mrb[0].mxu0 %v1204
        %v1240 = vpop.f32.mrb[0].mxu0
        %v1241 = vadd.f32 0.0, %v1240
        %v1242 = vpop.f32.mrb[0].mxu0
        %v1243 = vpop.f32.mrb[0].mxu0
        %v1244 = vpop.f32.mrb[0].mxu0
        %1245 = vdwg.mxu0
        %v1246 = vpack.c.bf16 %v1241, %v1241
        %s1247 = scalar_lea.vmem [#allocation7], 8
        %v1248 = vld [vmem:[%s1247] sm:$0xf]
        %v1250 = vsel %vm826, %v1246, 0
        %v1253 = vsel %vm1048, %v1248, 0
        %1255 = vmatprep.subr.bf16.mxu0 0
        %1256 = vmatpush1.bf16.msra.mxu0 %v1253
        %1257 = vmatprep.subr.bf16.mxu0 0
        %1258 = vmatpush1.bf16.msra.mxu0 0
        %1259 = vmatprep.subr.bf16.mxu0 0
        %1260 = vmatpush1.bf16.msra.mxu0 0
        %1261 = vmatprep.subr.bf16.mxu0 0
        %1262 = vmatpush1.bf16.msra.mxu0 0
        %1263 = vmatprep.subr.bf16.mxu0 0
        %1264 = vmatpush1.bf16.msra.mxu0 0
        %1265 = vmatprep.subr.bf16.mxu0 0
        %1266 = vmatpush1.bf16.msra.mxu0 0
        %1267 = vmatprep.subr.bf16.mxu0 0
        %1268 = vmatpush1.bf16.msra.mxu0 0
        %1269 = vmatprep.subr.bf16.mxu0 0
        %1270 = vmatpush1.bf16.msra.mxu0 0
        %1271 = vmatprep.subr.bf16.mxu0 0
        %1272 = vmatpush1.bf16.msra.mxu0 0
        %1273 = vmatprep.subr.bf16.mxu0 0
        %1274 = vmatpush1.bf16.msra.mxu0 0
        %1275 = vmatprep.subr.bf16.mxu0 0
        %1276 = vmatpush1.bf16.msra.mxu0 0
        %1277 = vmatprep.subr.bf16.mxu0 0
        %1278 = vmatpush1.bf16.msra.mxu0 0
        %1279 = vmatprep.subr.bf16.mxu0 0
        %1280 = vmatpush1.bf16.msra.mxu0 0
        %1281 = vmatprep.subr.bf16.mxu0 0
        %1282 = vmatpush1.bf16.msra.mxu0 0
        %1283 = vmatprep.subr.bf16.mxu0 0
        %1284 = vmatpush1.bf16.msra.mxu0 0
        %1285 = vmatprep.subr.bf16.mxu0 0
        %1286 = vmatpush1.bf16.msra.mxu0 0
        %1287 = vmatprep.mubr.bf16.mxu0 0
        %1288 = vmatmul.mubr.bf16.gmra.mrb[0].mxu0 %v1250
        %v1289 = vpop.f32.mrb[0].mxu0
        %v1290 = vadd.f32 0.0, %v1289
        %v1291 = vpop.f32.mrb[0].mxu0
        %v1292 = vpop.f32.mrb[0].mxu0
        %v1293 = vpop.f32.mrb[0].mxu0
        %1294 = vdwg.mxu0
        %v1295 = vadd.f32 %v1133, %v1290
        %1296 = vrot.lane.b32.xlu0 %v823, 104
        %v1297 = vpop.permute.xlu0 %1296
        %1298 = vrot.lane.b32.xlu0 %v824, 104
        %v1299 = vpop.permute.xlu0 %1298
        %v1301 = vsel %vm826, %v1297, 0
        %v1304 = vsel %vm826, %v1299, 0
        %1306 = vmatprep.subr.bf16.mxu0 0
        %1307 = vmatpush1.bf16.xpose.msra.mxu0 %v1304
        %1308 = vmatprep.subr.bf16.mxu0 0
        %1309 = vmatpush1.bf16.xpose.msra.mxu0 0
        %1310 = vmatprep.subr.bf16.mxu0 0
        %1311 = vmatpush1.bf16.xpose.msra.mxu0 0
        %1312 = vmatprep.subr.bf16.mxu0 0
        %1313 = vmatpush1.bf16.xpose.msra.mxu0 0
        %1314 = vmatprep.subr.bf16.mxu0 0
        %1315 = vmatpush1.bf16.xpose.msra.mxu0 0
        %1316 = vmatprep.subr.bf16.mxu0 0
        %1317 = vmatpush1.bf16.xpose.msra.mxu0 0
        %1318 = vmatprep.subr.bf16.mxu0 0
        %1319 = vmatpush1.bf16.xpose.msra.mxu0 0
        %1320 = vmatprep.subr.bf16.mxu0 0
        %1321 = vmatpush1.bf16.xpose.msra.mxu0 0
        %1322 = vmatprep.subr.bf16.mxu0 0
        %1323 = vmatpush1.bf16.xpose.msra.mxu0 0
        %1324 = vmatprep.subr.bf16.mxu0 0
        %1325 = vmatpush1.bf16.xpose.msra.mxu0 0
        %1326 = vmatprep.subr.bf16.mxu0 0
        %1327 = vmatpush1.bf16.xpose.msra.mxu0 0
        %1328 = vmatprep.subr.bf16.mxu0 0
        %1329 = vmatpush1.bf16.xpose.msra.mxu0 0
        %1330 = vmatprep.subr.bf16.mxu0 0
        %1331 = vmatpush1.bf16.xpose.msra.mxu0 0
        %1332 = vmatprep.subr.bf16.mxu0 0
        %1333 = vmatpush1.bf16.xpose.msra.mxu0 0
        %1334 = vmatprep.subr.bf16.mxu0 0
        %1335 = vmatpush1.bf16.xpose.msra.mxu0 0
        %1336 = vmatprep.subr.bf16.mxu0 0
        %1337 = vmatpush1.bf16.xpose.msra.mxu0 0
        %1338 = vmatprep.mubr.bf16.mxu0 0
        %1339 = vmatmul.mubr.bf16.gmra.mrb[0].mxu0 %v1301
        %v1340 = vpop.f32.mrb[0].mxu0
        %v1341 = vadd.f32 0.0, %v1340
        %v1342 = vpop.f32.mrb[0].mxu0
        %v1343 = vpop.f32.mrb[0].mxu0
        %v1344 = vpop.f32.mrb[0].mxu0
        %1345 = vdwg.mxu0
        %v1346 = vsel %vm873, %v1341, -inf
        %1347 = vmax.xlane.f32.xlu0 %v1346
        %v1348 = vpop.xlane.xlu0 %1347
        %v1349 = vsub.f32 %v1341, %v1348
        %v1350 = vmul.f32 %v1349, 1.442695
        %v1351 = vpow.pop %v1350
        %v1352 = vsel %vm873, %v1351, 0.0
        %1353 = vadd.xlane.f32.xlu0 %v1352
        %v1354 = vpop.xlane.xlu0 %1353
        %v1355 = vrcp.pop %v1354
        %v1356 = vmul.f32 %v1351, %v1355
        %v1357 = vpack.c.bf16 %v1356, %v1356
        %1358 = vrot.lane.b32.xlu0 %v825, 104
        %v1359 = vpop.permute.xlu0 %1358
        %v1362 = vsel %vm873, %v1357, 0
        %1364 = vmatprep.subr.bf16.mxu0 0
        %1365 = vmatpush1.bf16.msra.mxu0 %v1359
        %1366 = vmatprep.subr.bf16.mxu0 0
        %1367 = vmatpush1.bf16.msra.mxu0 0
        %1368 = vmatprep.subr.bf16.mxu0 0
        %1369 = vmatpush1.bf16.msra.mxu0 0
        %1370 = vmatprep.subr.bf16.mxu0 0
        %1371 = vmatpush1.bf16.msra.mxu0 0
        %1372 = vmatprep.subr.bf16.mxu0 0
        %1373 = vmatpush1.bf16.msra.mxu0 0
        %1374 = vmatprep.subr.bf16.mxu0 0
        %1375 = vmatpush1.bf16.msra.mxu0 0
        %1376 = vmatprep.subr.bf16.mxu0 0
        %1377 = vmatpush1.bf16.msra.mxu0 0
        %1378 = vmatprep.subr.bf16.mxu0 0
        %1379 = vmatpush1.bf16.msra.mxu0 0
        %1380 = vmatprep.subr.bf16.mxu0 0
        %1381 = vmatpush1.bf16.msra.mxu0 0
        %1382 = vmatprep.subr.bf16.mxu0 0
        %1383 = vmatpush1.bf16.msra.mxu0 0
        %1384 = vmatprep.subr.bf16.mxu0 0
        %1385 = vmatpush1.bf16.msra.mxu0 0
        %1386 = vmatprep.subr.bf16.mxu0 0
        %1387 = vmatpush1.bf16.msra.mxu0 0
        %1388 = vmatprep.subr.bf16.mxu0 0
        %1389 = vmatpush1.bf16.msra.mxu0 0
        %1390 = vmatprep.subr.bf16.mxu0 0
        %1391 = vmatpush1.bf16.msra.mxu0 0
        %1392 = vmatprep.subr.bf16.mxu0 0
        %1393 = vmatpush1.bf16.msra.mxu0 0
        %1394 = vmatprep.subr.bf16.mxu0 0
        %1395 = vmatpush1.bf16.msra.mxu0 0
        %1396 = vmatprep.mubr.bf16.mxu0 0
        %1397 = vmatmul.mubr.bf16.gmra.mrb[0].mxu0 %v1362
        %v1398 = vpop.f32.mrb[0].mxu0
        %v1399 = vadd.f32 0.0, %v1398
        %v1400 = vpop.f32.mrb[0].mxu0
        %v1401 = vpop.f32.mrb[0].mxu0
        %v1402 = vpop.f32.mrb[0].mxu0
        %1403 = vdwg.mxu0
        %v1404 = vpack.c.bf16 %v1399, %v1399
        %s1405 = scalar_lea.vmem [#allocation7], 12
        %v1406 = vld [vmem:[%s1405] sm:$0xf]
        %v1408 = vsel %vm826, %v1404, 0
        %v1411 = vsel %vm1048, %v1406, 0
        %1413 = vmatprep.subr.bf16.mxu0 0
        %1414 = vmatpush1.bf16.msra.mxu0 %v1411
        %1415 = vmatprep.subr.bf16.mxu0 0
        %1416 = vmatpush1.bf16.msra.mxu0 0
        %1417 = vmatprep.subr.bf16.mxu0 0
        %1418 = vmatpush1.bf16.msra.mxu0 0
        %1419 = vmatprep.subr.bf16.mxu0 0
        %1420 = vmatpush1.bf16.msra.mxu0 0
        %1421 = vmatprep.subr.bf16.mxu0 0
        %1422 = vmatpush1.bf16.msra.mxu0 0
        %1423 = vmatprep.subr.bf16.mxu0 0
        %1424 = vmatpush1.bf16.msra.mxu0 0
        %1425 = vmatprep.subr.bf16.mxu0 0
        %1426 = vmatpush1.bf16.msra.mxu0 0
        %1427 = vmatprep.subr.bf16.mxu0 0
        %1428 = vmatpush1.bf16.msra.mxu0 0
        %1429 = vmatprep.subr.bf16.mxu0 0
        %1430 = vmatpush1.bf16.msra.mxu0 0
        %1431 = vmatprep.subr.bf16.mxu0 0
        %1432 = vmatpush1.bf16.msra.mxu0 0
        %1433 = vmatprep.subr.bf16.mxu0 0
        %1434 = vmatpush1.bf16.msra.mxu0 0
        %1435 = vmatprep.subr.bf16.mxu0 0
        %1436 = vmatpush1.bf16.msra.mxu0 0
        %1437 = vmatprep.subr.bf16.mxu0 0
        %1438 = vmatpush1.bf16.msra.mxu0 0
        %1439 = vmatprep.subr.bf16.mxu0 0
        %1440 = vmatpush1.bf16.msra.mxu0 0
        %1441 = vmatprep.subr.bf16.mxu0 0
        %1442 = vmatpush1.bf16.msra.mxu0 0
        %1443 = vmatprep.subr.bf16.mxu0 0
        %1444 = vmatpush1.bf16.msra.mxu0 0
        %1445 = vmatprep.mubr.bf16.mxu0 0
        %1446 = vmatmul.mubr.bf16.gmra.mrb[0].mxu0 %v1408
        %v1447 = vpop.f32.mrb[0].mxu0
        %v1448 = vadd.f32 0.0, %v1447
        %v1449 = vpop.f32.mrb[0].mxu0
        %v1450 = vpop.f32.mrb[0].mxu0
        %v1451 = vpop.f32.mrb[0].mxu0
        %1452 = vdwg.mxu0
        %v1453 = vadd.f32 %v1295, %v1448
        %v1454 = vadd.f32 %v581, %v1453
        %v1455 = vld [vmem:[#allocation8] sm:$0x1]
        %v1456 = vld [vmem:[#allocation10] sm:$0x1]
        %v1457 = vsel %vm586, %v1454, 0.0
        %1458 = vadd.xlane.f32.xlu0 %v1457
        %v1459 = vpop.xlane.xlu0 %1458
        %v1460 = vmul.f32 %v1459, %v590
        %v1461 = vsub.f32 %v1454, %v1460
        %v1462 = vmul.f32 %v1461, %v1461
        %v1463 = vsel %vm586, %v1462, 0.0
        %1464 = vadd.xlane.f32.xlu0 %v1463
        %v1465 = vpop.xlane.xlu0 %1464
        %v1466 = vmul.f32 %v1465, %v590
        %v1467 = vadd.f32 %v1466, 1e-05
        %v1468 = vrsqrt.pop %v1467
        %v1469 = vmul.f32 %v1461, %v1468
        %v1471 = vlaneseq
        %v1472 = vshrl.u32 %v1471, 7
        %v1473 = vsub.s32 0, %v1472
        %v1474 = vrot.slane %v1455, %v1473
        %v1476 = vmul.f32 %v1469, %v1474
        %v1478 = vlaneseq
        %v1479 = vshrl.u32 %v1478, 7
        %v1480 = vsub.s32 0, %v1479
        %v1481 = vrot.slane %v1456, %v1480
        %v1483 = vadd.f32 %v1476, %v1481
        %v1484 = vpack.c.bf16 %v1483, %v1483
        %v1485 = vld [vmem:[%s10] sm:$0xf]
        %v1486 = vld [vmem:[%s10 + $0x4] sm:$0xf]
        %v1487 = vld [vmem:[%s10 + $0x8] sm:$0xf]
        %v1488 = vld [vmem:[%s10 + $0xc] sm:$0xf]
        %v1489 = vld [vmem:[%s11] sm:$0x1]
        %v1491 = vlaneseq
        %v1492 = vshrl.u32 %v1491, 7
        %v1493 = vsub.s32 0, %v1492
        %v1494 = vrot.slane %v1489, %v1493
        %v1500 = vunpack.c.l.b16 %v1485
        %v1501 = vunpack.c.l.b16 %v1486
        %v1502 = vunpack.c.l.b16 %v1487
        %v1503 = vunpack.c.l.b16 %v1488
        %v1504 = vpack.c.b16 %v1501, %v1500
        %v1505 = vpack.c.b16 %v1503, %v1502
        %v1509 = vsel %vm586, %v1484, 0
        %1511 = vmatprep.subr.bf16.mxu0 0
        %1512 = vmatpush1.bf16.msra.mxu0 %v1504
        %1513 = vmatprep.subr.bf16.mxu0 0
        %1514 = vmatpush1.bf16.msra.mxu0 %v1505
        %1515 = vmatprep.subr.bf16.mxu0 0
        %1516 = vmatpush1.bf16.msra.mxu0 0
        %1517 = vmatprep.subr.bf16.mxu0 0
        %1518 = vmatpush1.bf16.msra.mxu0 0
        %1519 = vmatprep.subr.bf16.mxu0 0
        %1520 = vmatpush1.bf16.msra.mxu0 0
        %1521 = vmatprep.subr.bf16.mxu0 0
        %1522 = vmatpush1.bf16.msra.mxu0 0
        %1523 = vmatprep.subr.bf16.mxu0 0
        %1524 = vmatpush1.bf16.msra.mxu0 0
        %1525 = vmatprep.subr.bf16.mxu0 0
        %1526 = vmatpush1.bf16.msra.mxu0 0
        %1527 = vmatprep.subr.bf16.mxu0 0
        %1528 = vmatpush1.bf16.msra.mxu0 0
        %1529 = vmatprep.subr.bf16.mxu0 0
        %1530 = vmatpush1.bf16.msra.mxu0 0
        %1531 = vmatprep.subr.bf16.mxu0 0
        %1532 = vmatpush1.bf16.msra.mxu0 0
        %1533 = vmatprep.subr.bf16.mxu0 0
        %1534 = vmatpush1.bf16.msra.mxu0 0
        %1535 = vmatprep.subr.bf16.mxu0 0
        %1536 = vmatpush1.bf16.msra.mxu0 0
        %1537 = vmatprep.subr.bf16.mxu0 0
        %1538 = vmatpush1.bf16.msra.mxu0 0
        %1539 = vmatprep.subr.bf16.mxu0 0
        %1540 = vmatpush1.bf16.msra.mxu0 0
        %1541 = vmatprep.subr.bf16.mxu0 0
        %1542 = vmatpush1.bf16.msra.mxu0 0
        %1543 = vmatprep.mubr.bf16.mxu0 0
        %1544 = vmatmul.mubr.bf16.gmra.mrb[0].mxu0 %v1509
        %v1545 = vpop.f32.mrb[0].mxu0
        %v1546 = vadd.f32 %v1494, %v1545
        %v1547 = vpop.f32.mrb[0].mxu0
        %v1548 = vpop.f32.mrb[0].mxu0
        %v1549 = vpop.f32.mrb[0].mxu0
        %1550 = vdwg.mxu0
        %v1551 = vmax.f32 %v1546, 0.0
        %v1552 = vpack.c.bf16 %v1551, %v1551
        %v1553 = vld [vmem:[%s12] sm:$0xf]
        %v1554 = vld [vmem:[%s12 + $0x4] sm:$0xf]
        %v1555 = vld [vmem:[%s12 + $0x8] sm:$0xf]
        %v1556 = vld [vmem:[%s12 + $0xc] sm:$0xf]
        %v1557 = vld [vmem:[%s12 + $0x10] sm:$0xf]
        %v1558 = vld [vmem:[%s12 + $0x14] sm:$0xf]
        %v1559 = vld [vmem:[%s12 + $0x18] sm:$0xf]
        %v1560 = vld [vmem:[%s12 + $0x1c] sm:$0xf]
        %v1561 = vld [vmem:[%s12 + $0x20] sm:$0xf]
        %v1562 = vld [vmem:[%s12 + $0x24] sm:$0xf]
        %v1563 = vld [vmem:[%s12 + $0x28] sm:$0xf]
        %v1564 = vld [vmem:[%s12 + $0x2c] sm:$0xf]
        %v1565 = vld [vmem:[%s12 + $0x30] sm:$0xf]
        %v1566 = vld [vmem:[%s12 + $0x34] sm:$0xf]
        %v1567 = vld [vmem:[%s12 + $0x38] sm:$0xf]
        %v1568 = vld [vmem:[%s12 + $0x3c] sm:$0xf]
        %v1569 = vld [vmem:[%s13] sm:$0x1]
        %v1571 = vlaneseq
        %v1572 = vshrl.u32 %v1571, 7
        %v1573 = vsub.s32 0, %v1572
        %v1574 = vrot.slane %v1569, %v1573
        %v1592 = vunpack.c.l.b16 %v1553
        %v1593 = vunpack.c.l.b16 %v1554
        %v1594 = vunpack.c.l.b16 %v1555
        %v1595 = vunpack.c.l.b16 %v1556
        %v1596 = vunpack.c.l.b16 %v1557
        %v1597 = vunpack.c.l.b16 %v1558
        %v1598 = vunpack.c.l.b16 %v1559
        %v1599 = vunpack.c.l.b16 %v1560
        %v1600 = vunpack.c.l.b16 %v1561
        %v1601 = vunpack.c.l.b16 %v1562
        %v1602 = vunpack.c.l.b16 %v1563
        %v1603 = vunpack.c.l.b16 %v1564
        %v1604 = vunpack.c.l.b16 %v1565
        %v1605 = vunpack.c.l.b16 %v1566
        %v1606 = vunpack.c.l.b16 %v1567
        %v1607 = vunpack.c.l.b16 %v1568
        %v1608 = vpack.c.b16 %v1593, %v1592
        %v1609 = vpack.c.b16 %v1595, %v1594
        %v1610 = vpack.c.b16 %v1597, %v1596
        %v1611 = vpack.c.b16 %v1599, %v1598
        %v1612 = vpack.c.b16 %v1601, %v1600
        %v1613 = vpack.c.b16 %v1603, %v1602
        %v1614 = vpack.c.b16 %v1605, %v1604
        %v1615 = vpack.c.b16 %v1607, %v1606
        %1624 = vmatprep.subr.bf16.mxu0 0
        %1625 = vmatpush1.bf16.msra.mxu0 %v1608
        %1626 = vmatprep.subr.bf16.mxu0 0
        %1627 = vmatpush1.bf16.msra.mxu0 %v1609
        %1628 = vmatprep.subr.bf16.mxu0 0
        %1629 = vmatpush1.bf16.msra.mxu0 %v1610
        %1630 = vmatprep.subr.bf16.mxu0 0
        %1631 = vmatpush1.bf16.msra.mxu0 %v1611
        %1632 = vmatprep.subr.bf16.mxu0 0
        %1633 = vmatpush1.bf16.msra.mxu0 %v1612
        %1634 = vmatprep.subr.bf16.mxu0 0
        %1635 = vmatpush1.bf16.msra.mxu0 %v1613
        %1636 = vmatprep.subr.bf16.mxu0 0
        %1637 = vmatpush1.bf16.msra.mxu0 %v1614
        %1638 = vmatprep.subr.bf16.mxu0 0
        %1639 = vmatpush1.bf16.msra.mxu0 %v1615
        %1640 = vmatprep.subr.bf16.mxu0 0
        %1641 = vmatpush1.bf16.msra.mxu0 0
        %1642 = vmatprep.subr.bf16.mxu0 0
        %1643 = vmatpush1.bf16.msra.mxu0 0
        %1644 = vmatprep.subr.bf16.mxu0 0
        %1645 = vmatpush1.bf16.msra.mxu0 0
        %1646 = vmatprep.subr.bf16.mxu0 0
        %1647 = vmatpush1.bf16.msra.mxu0 0
        %1648 = vmatprep.subr.bf16.mxu0 0
        %1649 = vmatpush1.bf16.msra.mxu0 0
        %1650 = vmatprep.subr.bf16.mxu0 0
        %1651 = vmatpush1.bf16.msra.mxu0 0
        %1652 = vmatprep.subr.bf16.mxu0 0
        %1653 = vmatpush1.bf16.msra.mxu0 0
        %1654 = vmatprep.subr.bf16.mxu0 0
        %1655 = vmatpush1.bf16.msra.mxu0 0
        %1656 = vmatprep.mubr.bf16.mxu0 0
        %1657 = vmatmul.mubr.bf16.gmra.mrb[0].mxu0 %v1552
        %v1658 = vpop.f32.mrb[0].mxu0
        %v1659 = vadd.f32 %v1574, %v1658
        %v1660 = vpop.f32.mrb[0].mxu0
        %v1661 = vpop.f32.mrb[0].mxu0
        %v1662 = vpop.f32.mrb[0].mxu0
        %1663 = vdwg.mxu0
        %v1664 = vadd.f32 %v1454, %v1659
        %1665 = vst.msk [vmem:[%s566] sm:$0xff] %vm586, %v1664
        %s1666 = sand.u32 %s359, 1
        %s1667 = scalar_lea.sflag [#allocation4], %s1666
        %s1668 = sand.u32 %s359, 1
        %s1669 = smul.addr %s1668, 8
        %s1670 = scalar_lea.vmem [#allocation11], %s1669
        // Predicated region
        $region97: #{tpu_custom_call.1} parent=75 // pred_check
          %p1671 = pneg %p369
        $region98: #{tpu_custom_call.1} parent=75 // pred_check_branch
          %1673 = sbr.rel (%p1671) target = $region100
        $region99: #{tpu_custom_call.1} parent=75 // pred_region
          %s1675 = ssub.s32 128, 128
          %1676 = vsyncadd %s1667, %s1675
          %s1677 = smul.addr %s35, 2
          %s1678 = sadd.s32 %s36, %s1677
          %s1679 = smul.addr %s1678, 128
          %s1680 = scalar_lea.hbm %s14, %s1679
          %s1682 = sshll.u32 %s1670, 4
          %s1683 = int_to_ptr.vmem [resolvable:$true] %s1682
          %1685 = dma.vmem_to_hbm [thread:$0]  %s1683, 128, %s1680, %s1667
        $region100: #{tpu_custom_call.1} parent=75 // pred_fallthru
          _
      $region76: #{tpu_custom_call.1} parent=5 // pred_fallthru
        _
      %p1686 = scmp.le.s32.totalorder 2, %s26
      // Predicated region
      $region101: #{tpu_custom_call.1} parent=5 // pred_check
        %p1687 = pneg %p1686
      $region102: #{tpu_custom_call.1} parent=5 // pred_check_branch
        %1689 = sbr.rel (%p1687) target = $region104
      $region103: #{tpu_custom_call.1} parent=5 // pred_region
        %s1690 = ssub.s32 %s26, 2
        // Predicated region
        $region105: #{tpu_custom_call.1} parent=103 // pred_check
          %p1691 = pneg %p375
        $region106: #{tpu_custom_call.1} parent=103 // pred_check_branch
          %1693 = sbr.rel (%p1691) target = $region108
        $region107: #{tpu_custom_call.1} parent=103 // pred_region
          %s1694 = sand.u32 %s360, 1
          %s1695 = scalar_lea.sflag [#allocation4], %s1694
          %s1696 = sand.u32 %s360, 1
          %s1697 = smul.addr %s1696, 8
          %s1698 = scalar_lea.vmem [#allocation11], %s1697
          %1699 = dma.done %s1695, 128
        $region108: #{tpu_custom_call.1} parent=103 // pred_fallthru
          _
      $region104: #{tpu_custom_call.1} parent=5 // pred_fallthru
        _
    $region6: #{tpu_custom_call.1} parent=1 // loop_footer
      %s30 = sadd.s32 1, %s26
    $region7: #{tpu_custom_call.1} parent=1 // loop_footer_branch
      %25 = sbr.rel target = $region3
    $region8: #{tpu_custom_call.1} parent=1 // loop_exit
      _
    %1700 = vsyncpa [#allocation3], 1
    %s1701 = scalar_lea.sflag [#allocation3], 1
    %1702 = vsyncpa %s1701, 1
    %1703 = vsyncpa [#allocation6], 1
    %1704 = vsyncpa [#allocation9], 1
    %1705 = vsyncpa [#allocation4], 1
    %s1706 = scalar_lea.sflag [#allocation4], 1
    %1707 = vsyncpa %s1706, 1

</llo_original>
